<compile_context>
chip_gen: v7x
topology: tpu7x:2x2x1
jax: 0.10.0
libtpu: 0.0.40
codegen_flags: <defaults>
</compile_context>

<pallas_src>
import functools

import jax
import jax.numpy as jnp
from jax.experimental import pallas as pl
from jax.experimental.pallas import tpu as pltpu


def _round_up(x, m):
    return ((x + m - 1) // m) * m


# --------------------------- Pallas kernels ---------------------------------

def _conv_tile(x_ref, w_ref, b_ref, *, tile_rows, tap_offsets):
    """Conv output for this (image, row-tile): one MXU contraction of depth KH*KW*Cin."""
    start = pl.multiple_of(pl.program_id(1) * tile_rows, 8)
    cols = [x_ref[0, pl.ds(start + off, tile_rows), :] for off in tap_offsets]
    patch = jnp.concatenate(cols, axis=-1)                  # (tile_rows, KH*KW*Cin)
    acc = jnp.dot(patch, w_ref[...], preferred_element_type=jnp.float32)
    return acc + b_ref[0]                                   # (1, Coutp) broadcast


def _row_mask(tile_rows, wq, ow, ly):
    # valid iff global flat row < Ly and its column-within-row < OW
    row = (jax.lax.broadcasted_iota(jnp.int32, (tile_rows, 1), 0)
           + pl.program_id(1) * tile_rows)
    return (row < ly) & ((row % wq) < ow)


def _conv_stats_kernel(x_ref, w_ref, b_ref, stats_ref, *,
                       tile_rows, tap_offsets, wq, ow, ly):
    # stats_ref block: (1, 1, 8, Coutp); row 0 = sum, row 1 = sum of squares.
    acc = _conv_tile(x_ref, w_ref, b_ref,
                     tile_rows=tile_rows, tap_offsets=tap_offsets)
    masked = jnp.where(_row_mask(tile_rows, wq, ow, ly), acc, 0.0)
    coutp = acc.shape[-1]
    stats_ref[0, 0] = jnp.zeros((8, coutp), jnp.float32)
    stats_ref[0, 0, 0:1, :] = jnp.sum(masked, axis=0, keepdims=True)
    stats_ref[0, 0, 1:2, :] = jnp.sum(masked * masked, axis=0, keepdims=True)


def _conv_bn_act_kernel(x_ref, w_ref, b_ref, scale_ref, shift_ref, o_ref, *,
                        tile_rows, tap_offsets, cout):
    # Recompute the (cheap) conv, fuse folded BN affine + LeakyReLU, store only the
    # real Cout channels.
    acc = _conv_tile(x_ref, w_ref, b_ref,
                     tile_rows=tile_rows, tap_offsets=tap_offsets)
    z = acc * scale_ref[0] + shift_ref[0]
    z = jnp.maximum(z, 0.1 * z)                             # LeakyReLU(0.1)
    o_ref[0] = z[:, :cout].astype(o_ref.dtype)


# --------------------------- Wrapper -----------------------------------------

def conv_block_forward(x_nchw, weight, bias, gamma, beta, *, stride, padding,
                       eps=1e-5, compute_dtype=jnp.bfloat16,
                       out_dtype=jnp.float32):
    N, Cin, H, W = x_nchw.shape
    Cout, _, KH, KW = weight.shape
    s = int(stride)
    Hp, Wp = H + 2 * padding, W + 2 * padding
    OH = (Hp - KH) // s + 1
    OW = (Wp - KW) // s + 1
    Hq, Wq = -(-Hp // s), -(-Wp // s)           # phase-grid dims (== Hp, Wp for s==1)
    n_phase = s * s
    Ly = OH * Wq                                # flat rows/image incl. (Wq-OW) garbage

    Coutp = _round_up(Cout, 128)                # lane-dense MXU result / stats
    K = KH * KW * Cin

    # row tile: multiple of 8, capped so the per-tile f32 accumulator <= ~512x128
    tile_cap = max(8, ((512 * 128) // Coutp) // 8 * 8)
    tile_rows = min(tile_cap, _round_up(Ly, 8))
    T = -(-Ly // tile_rows)
    Ly_pad = T * tile_rows

    # ---- input: NCHW -> padded NHWC -> stride-phase slabs, flattened spatially ---
    x = jnp.transpose(x_nchw, (0, 2, 3, 1)).astype(compute_dtype)        # NHWC
    x = jnp.pad(x, ((0, 0), (padding, padding), (padding, padding), (0, 0)))
    if s > 1:
        # space-to-batch: phase (rh, rw) grid holds xp[a*s+rh, b*s+rw, :]
        x = jnp.pad(x, ((0, 0), (0, Hq * s - Hp), (0, Wq * s - Wp), (0, 0)))
        x = x.reshape(N, Hq, s, Wq, s, Cin)
        x = jnp.transpose(x, (0, 2, 4, 1, 3, 5))            # (N, rh, rw, Hq, Wq, Cin)
    xf = x.reshape(N, n_phase * Hq * Wq, Cin)

    # tap (kh, kw): phase (kh%s, kw%s), in-phase offset (kh//s)*Wq + kw//s
    tap_offsets = tuple(
        ((kh % s) * s + (kw % s)) * (Hq * Wq) + (kh // s) * Wq + (kw // s)
        for kh in range(KH) for kw in range(KW))
    off_max = max(tap_offsets)
    S_total = max(n_phase * Hq * Wq, off_max + Ly_pad)      # keep all slices in-bounds
    if S_total > xf.shape[1]:
        xf = jnp.pad(xf, ((0, 0), (0, S_total - xf.shape[1]), (0, 0)))

    # ---- weights / bias: single (K, Coutp) contraction matrix --------------------
    w = jnp.transpose(weight, (2, 3, 1, 0)).reshape(K, Cout)  # rows ordered (kh,kw,cin)
    w = jnp.pad(w, ((0, 0), (0, Coutp - Cout))).astype(compute_dtype)
    b = jnp.pad(bias.astype(jnp.float32), (0, Coutp - Cout)).reshape(1, 1, Coutp)

    grid = (N, T)
    x_spec = pl.BlockSpec((1, S_total, Cin), lambda n, t: (n, 0, 0))   # resident per n
    w_spec = pl.BlockSpec((K, Coutp), lambda n, t: (0, 0))
    b_spec = pl.BlockSpec((1, 1, Coutp), lambda n, t: (0, 0, 0))

    # ---- pass 1: conv (recomputed, never stored) -> per-tile BN statistics -------
    stats = pl.pallas_call(
        functools.partial(_conv_stats_kernel, tile_rows=tile_rows,
                          tap_offsets=tap_offsets, wq=Wq, ow=OW, ly=Ly),
        out_shape=jax.ShapeDtypeStruct((N, T, 8, Coutp), jnp.float32),
        grid=grid,
        in_specs=[x_spec, w_spec, b_spec],
        out_specs=pl.BlockSpec((1, 1, 8, Coutp), lambda n, t: (n, t, 0, 0)),
        compiler_params=pltpu.CompilerParams(
            dimension_semantics=("parallel", "parallel")),
    )(xf, w, b)

    # ---- BN batch statistics (training-mode) + folded affine ----------------------
    cnt = float(N * OH * OW)
    psum = jnp.sum(stats[:, :, 0, :], axis=(0, 1))           # (Coutp,)
    psq = jnp.sum(stats[:, :, 1, :], axis=(0, 1))
    mean = psum / cnt
    var = jnp.maximum(psq / cnt - mean * mean, 0.0)
    inv = jax.lax.rsqrt(var + eps)
    gamma_p = jnp.pad(gamma.astype(jnp.float32), (0, Coutp - Cout))
    beta_p = jnp.pad(beta.astype(jnp.float32), (0, Coutp - Cout))
    scale = (gamma_p * inv).reshape(1, 1, Coutp)
    shift = (beta_p - mean * gamma_p * inv).reshape(1, 1, Coutp)

    # ---- pass 2: conv recompute + BN affine + LeakyReLU, store real channels only --
    out_p = pl.pallas_call(
        functools.partial(_conv_bn_act_kernel, tile_rows=tile_rows,
                          tap_offsets=tap_offsets, cout=Cout),
        out_shape=jax.ShapeDtypeStruct((N, Ly_pad, Cout), out_dtype),
        grid=grid,
        in_specs=[x_spec, w_spec, b_spec,
                  pl.BlockSpec((1, 1, Coutp), lambda n, t: (0, 0, 0)),
                  pl.BlockSpec((1, 1, Coutp), lambda n, t: (0, 0, 0))],
        out_specs=pl.BlockSpec((1, tile_rows, Cout), lambda n, t: (n, t, 0)),
        compiler_params=pltpu.CompilerParams(
            dimension_semantics=("parallel", "parallel")),
    )(xf, w, b, scale, shift)

    # strip garbage columns / padded rows; deliver NCHW (tiny XLA reshape/transpose)
    out = out_p[:, :Ly, :].reshape(N, OH, Wq, Cout)[:, :, :OW, :]
    return jnp.transpose(out, (0, 3, 1, 2))


# --------------------------- Reference (pure JAX) ----------------------------

def _reference(x, weight, bias, gamma, beta, stride, padding, eps=1e-5):
    y = jax.lax.conv_general_dilated(
        x.astype(jnp.float32), weight.astype(jnp.float32),
        window_strides=(stride, stride),
        padding=[(padding, padding), (padding, padding)],
        dimension_numbers=("NCHW", "OIHW", "NCHW"))
    y = y + bias.reshape(1, -1, 1, 1)
    mean = jnp.mean(y, axis=(0, 2, 3), keepdims=True)
    var = jnp.mean((y - mean) ** 2, axis=(0, 2, 3), keepdims=True)
    z = (y - mean) * jax.lax.rsqrt(var + eps)
    z = z * gamma.reshape(1, -1, 1, 1) + beta.reshape(1, -1, 1, 1)
    return jnp.where(z >= 0, z, 0.1 * z)


# --------------------------- Main --------------------------------------------

if __name__ == "__main__":
    def run_case(stride, padding, compute_dtype, tol):
        in_channels, out_channels, kernel_size = 4, 8, 3
        N, H, W = 2, 16, 16
        key = jax.random.PRNGKey(0)
        k_x, k_w, k_b, k_g, k_beta = jax.random.split(key, 5)
        x = jax.random.normal(k_x, (N, in_channels, H, W), dtype=jnp.float32)
        weight = 0.1 * jax.random.normal(
            k_w, (out_channels, in_channels, kernel_size, kernel_size),
            dtype=jnp.float32)
        bias = 0.1 * jax.random.normal(k_b, (out_channels,), dtype=jnp.float32)
        gamma = 1.0 + 0.1 * jax.random.normal(k_g, (out_channels,), dtype=jnp.float32)
        beta = 0.1 * jax.random.normal(k_beta, (out_channels,), dtype=jnp.float32)

        out = conv_block_forward(x, weight, bias, gamma, beta,
                                 stride=stride, padding=padding,
                                 compute_dtype=compute_dtype)
        out = jax.block_until_ready(out)
        ref = _reference(x, weight, bias, gamma, beta, stride, padding)
        assert out.shape == ref.shape, (out.shape, ref.shape)
        err = float(jnp.max(jnp.abs(out - ref)))
        assert err < tol, (stride, str(compute_dtype), err)

    # ConvBlock(4, 8, kernel_size=3, stride=1, padding=1), f32 (tight check)
    run_case(1, 1, jnp.float32, 1e-4)
    # strided ConvBlock (space-to-batch phase path), f32
    run_case(2, 1, jnp.float32, 1e-4)
    # default bf16 inputs / f32 accumulation (loose check)
    run_case(1, 1, jnp.bfloat16, 1e-1)

    print("KERNEL_OK")
</pallas_src>

<mosaic_0001>
module attributes {stable_mosaic.version = 11 : i64} {
  func.func @_conv_stats_kernel(%arg0: i32, %arg1: i32, %arg2: memref<1x326x4xf32, #tpu.memory_space<vmem>>, %arg3: memref<36x128xf32, #tpu.memory_space<vmem>>, %arg4: memref<1x1x128xf32, #tpu.memory_space<vmem>>, %arg5: memref<1x1x8x128xf32, #tpu.memory_space<vmem>>) attributes {dimension_semantics = [#tpu.dimension_semantics<parallel>, #tpu.dimension_semantics<parallel>], iteration_bounds = array<i64: 2, 1>, scalar_prefetch = 0 : i64, scratch_operands = 0 : i64, tpu.core_type = #tpu.core_type<tc>, window_params = [{transform_indices = @transform_0, window_bounds = array<i64: 1, 326, 4>}, {pipeline_mode = #tpu.pipeline_mode<synchronous>, transform_indices = @transform_1, window_bounds = array<i64: 36, 128>}, {pipeline_mode = #tpu.pipeline_mode<synchronous>, transform_indices = @transform_2, window_bounds = array<i64: 1, 1, 128>}, {transform_indices = @transform_3, window_bounds = array<i64: 1, 1, 8, 128>}]} {
    %c288_i32 = arith.constant 288 : i32
    %0 = arith.muli %arg1, %c288_i32 : i32
    %1 = tpu.assume_multiple %0, 8 : i32
    %c0_i32 = arith.constant 0 : i32
    %2 = arith.addi %1, %c0_i32 : i32
    %c0 = arith.constant 0 : index
    %3 = arith.index_cast %2 : i32 to index
    %c0_0 = arith.constant 0 : index
    %4 = vector.load %arg2[%c0, %3, %c0_0] : memref<1x326x4xf32, #tpu.memory_space<vmem>>, vector<1x288x4xf32>
    %5 = vector.shape_cast %4 : vector<1x288x4xf32> to vector<288x4xf32>
    %c1_i32 = arith.constant 1 : i32
    %6 = arith.addi %1, %c1_i32 : i32
    %c0_1 = arith.constant 0 : index
    %7 = arith.index_cast %6 : i32 to index
    %c0_2 = arith.constant 0 : index
    %8 = vector.load %arg2[%c0_1, %7, %c0_2] : memref<1x326x4xf32, #tpu.memory_space<vmem>>, vector<1x288x4xf32>
    %9 = vector.shape_cast %8 : vector<1x288x4xf32> to vector<288x4xf32>
    %c2_i32 = arith.constant 2 : i32
    %10 = arith.addi %1, %c2_i32 : i32
    %c0_3 = arith.constant 0 : index
    %11 = arith.index_cast %10 : i32 to index
    %c0_4 = arith.constant 0 : index
    %12 = vector.load %arg2[%c0_3, %11, %c0_4] : memref<1x326x4xf32, #tpu.memory_space<vmem>>, vector<1x288x4xf32>
    %13 = vector.shape_cast %12 : vector<1x288x4xf32> to vector<288x4xf32>
    %c18_i32 = arith.constant 18 : i32
    %14 = arith.addi %1, %c18_i32 : i32
    %c0_5 = arith.constant 0 : index
    %15 = arith.index_cast %14 : i32 to index
    %c0_6 = arith.constant 0 : index
    %16 = vector.load %arg2[%c0_5, %15, %c0_6] : memref<1x326x4xf32, #tpu.memory_space<vmem>>, vector<1x288x4xf32>
    %17 = vector.shape_cast %16 : vector<1x288x4xf32> to vector<288x4xf32>
    %c19_i32 = arith.constant 19 : i32
    %18 = arith.addi %1, %c19_i32 : i32
    %c0_7 = arith.constant 0 : index
    %19 = arith.index_cast %18 : i32 to index
    %c0_8 = arith.constant 0 : index
    %20 = vector.load %arg2[%c0_7, %19, %c0_8] : memref<1x326x4xf32, #tpu.memory_space<vmem>>, vector<1x288x4xf32>
    %21 = vector.shape_cast %20 : vector<1x288x4xf32> to vector<288x4xf32>
    %c20_i32 = arith.constant 20 : i32
    %22 = arith.addi %1, %c20_i32 : i32
    %c0_9 = arith.constant 0 : index
    %23 = arith.index_cast %22 : i32 to index
    %c0_10 = arith.constant 0 : index
    %24 = vector.load %arg2[%c0_9, %23, %c0_10] : memref<1x326x4xf32, #tpu.memory_space<vmem>>, vector<1x288x4xf32>
    %25 = vector.shape_cast %24 : vector<1x288x4xf32> to vector<288x4xf32>
    %c36_i32 = arith.constant 36 : i32
    %26 = arith.addi %1, %c36_i32 : i32
    %c0_11 = arith.constant 0 : index
    %27 = arith.index_cast %26 : i32 to index
    %c0_12 = arith.constant 0 : index
    %28 = vector.load %arg2[%c0_11, %27, %c0_12] : memref<1x326x4xf32, #tpu.memory_space<vmem>>, vector<1x288x4xf32>
    %29 = vector.shape_cast %28 : vector<1x288x4xf32> to vector<288x4xf32>
    %c37_i32 = arith.constant 37 : i32
    %30 = arith.addi %1, %c37_i32 : i32
    %c0_13 = arith.constant 0 : index
    %31 = arith.index_cast %30 : i32 to index
    %c0_14 = arith.constant 0 : index
    %32 = vector.load %arg2[%c0_13, %31, %c0_14] : memref<1x326x4xf32, #tpu.memory_space<vmem>>, vector<1x288x4xf32>
    %33 = vector.shape_cast %32 : vector<1x288x4xf32> to vector<288x4xf32>
    %c38_i32 = arith.constant 38 : i32
    %34 = arith.addi %1, %c38_i32 : i32
    %c0_15 = arith.constant 0 : index
    %35 = arith.index_cast %34 : i32 to index
    %c0_16 = arith.constant 0 : index
    %36 = vector.load %arg2[%c0_15, %35, %c0_16] : memref<1x326x4xf32, #tpu.memory_space<vmem>>, vector<1x288x4xf32>
    %37 = vector.shape_cast %36 : vector<1x288x4xf32> to vector<288x4xf32>
    %38 = tpu.concatenate %5, %9, %13, %17, %21, %25, %29, %33, %37 in 1 : vector<288x4xf32>, vector<288x4xf32>, vector<288x4xf32>, vector<288x4xf32>, vector<288x4xf32>, vector<288x4xf32>, vector<288x4xf32>, vector<288x4xf32>, vector<288x4xf32> -> vector<288x36xf32>
    %c0_17 = arith.constant 0 : index
    %c0_18 = arith.constant 0 : index
    %39 = vector.load %arg3[%c0_17, %c0_18] : memref<36x128xf32, #tpu.memory_space<vmem>>, vector<36x128xf32>
    %cst = arith.constant dense<0.000000e+00> : vector<288x128xf32>
    %40 = tpu.matmul %38, %39, %cst {dimension_numbers = #tpu.dot_dimension_numbers<[1], [0], [0], [1], [0, 0, 1, 1], [], []>} : vector<288x36xf32>, vector<36x128xf32>, vector<288x128xf32> -> vector<288x128xf32>
    %c0_19 = arith.constant 0 : index
    %c0_20 = arith.constant 0 : index
    %c0_21 = arith.constant 0 : index
    %41 = vector.load %arg4[%c0_19, %c0_20, %c0_21] : memref<1x1x128xf32, #tpu.memory_space<vmem>>, vector<1x1x128xf32>
    %42 = vector.shape_cast %41 : vector<1x1x128xf32> to vector<1x128xf32>
    %43 = vector.broadcast %42 : vector<1x128xf32> to vector<288x128xf32>
    %44 = arith.addf %40, %43 : vector<288x128xf32>
    %45 = tpu.iota {dimensions = array<i32: 0>} : vector<288x1xi32>
    %c288_i32_22 = arith.constant 288 : i32
    %46 = arith.muli %arg1, %c288_i32_22 : i32
    %47 = vector.broadcast %46 : i32 to vector<288x1xi32>
    %48 = arith.addi %45, %47 : vector<288x1xi32>
    %c288_i32_23 = arith.constant 288 : i32
    %49 = vector.broadcast %c288_i32_23 : i32 to vector<288x1xi32>
    %50 = arith.cmpi slt, %48, %49 : vector<288x1xi32>
    %c18_i32_24 = arith.constant 18 : i32
    %c0_i32_25 = arith.constant 0 : i32
    %51 = arith.cmpi eq, %c18_i32_24, %c0_i32_25 : i32
    %c1_i32_26 = arith.constant 1 : i32
    %52 = arith.select %51, %c1_i32_26, %c18_i32_24 : i32
    %53 = vector.broadcast %52 : i32 to vector<288x1xi32>
    %54 = arith.remsi %48, %53 : vector<288x1xi32>
    %c0_i32_27 = arith.constant 0 : i32
    %55 = vector.broadcast %c0_i32_27 : i32 to vector<288x1xi32>
    %56 = arith.cmpi ne, %54, %55 : vector<288x1xi32>
    %c0_i32_28 = arith.constant 0 : i32
    %57 = vector.broadcast %c0_i32_28 : i32 to vector<288x1xi32>
    %58 = arith.cmpi slt, %54, %57 : vector<288x1xi32>
    %c0_i32_29 = arith.constant 0 : i32
    %59 = arith.cmpi slt, %52, %c0_i32_29 : i32
    %60 = vector.broadcast %59 : i1 to vector<288x1xi1>
    %61 = vector.broadcast %60 : vector<288x1xi1> to vector<288x1xi1>
    %62 = arith.xori %58, %61 : vector<288x1xi1>
    %63 = arith.andi %62, %56 : vector<288x1xi1>
    %64 = vector.broadcast %52 : i32 to vector<288x1xi32>
    %65 = arith.addi %54, %64 : vector<288x1xi32>
    %66 = arith.select %63, %65, %54 : vector<288x1xi1>, vector<288x1xi32>
    %c16_i32 = arith.constant 16 : i32
    %67 = vector.broadcast %c16_i32 : i32 to vector<288x1xi32>
    %68 = arith.cmpi slt, %66, %67 : vector<288x1xi32>
    %69 = arith.andi %50, %68 : vector<288x1xi1>
    %cst_30 = arith.constant 0.000000e+00 : f32
    %70 = vector.shape_cast %69 : vector<288x1xi1> to vector<288x1xi1>
    %71 = vector.broadcast %70 : vector<288x1xi1> to vector<288x128xi1>
    %72 = vector.broadcast %cst_30 : f32 to vector<288x128xf32>
    %73 = arith.select %71, %44, %72 : vector<288x128xi1>, vector<288x128xf32>
    %cst_31 = arith.constant 0.000000e+00 : f32
    %74 = vector.broadcast %cst_31 : f32 to vector<8x128xf32>
    %c0_32 = arith.constant 0 : index
    %c0_33 = arith.constant 0 : index
    %c0_34 = arith.constant 0 : index
    %c0_35 = arith.constant 0 : index
    %75 = vector.load %arg5[%c0_32, %c0_33, %c0_34, %c0_35] : memref<1x1x8x128xf32, #tpu.memory_space<vmem>>, vector<1x1x8x128xf32>
    %76 = vector.shape_cast %75 : vector<1x1x8x128xf32> to vector<8x128xf32>
    %77 = vector.shape_cast %74 : vector<8x128xf32> to vector<1x1x8x128xf32>
    tpu.vector_store %arg5[%c0_32, %c0_33, %c0_34, %c0_35], %77 {strides = array<i32>} : memref<1x1x8x128xf32, #tpu.memory_space<vmem>>, vector<1x1x8x128xf32>,
    %cst_36 = arith.constant dense<0.000000e+00> : vector<128xf32>
    %78 = vector.multi_reduction <add>, %73, %cst_36 [0] : vector<288x128xf32> to vector<128xf32>
    %79 = vector.shape_cast %78 : vector<128xf32> to vector<1x128xf32>
    %c0_37 = arith.constant 0 : index
    %c0_38 = arith.constant 0 : index
    %c0_39 = arith.constant 0 : index
    %c0_40 = arith.constant 0 : index
    %80 = vector.load %arg5[%c0_37, %c0_38, %c0_39, %c0_40] : memref<1x1x8x128xf32, #tpu.memory_space<vmem>>, vector<1x1x1x128xf32>
    %81 = vector.shape_cast %80 : vector<1x1x1x128xf32> to vector<1x128xf32>
    %82 = vector.shape_cast %79 : vector<1x128xf32> to vector<1x1x1x128xf32>
    tpu.vector_store %arg5[%c0_37, %c0_38, %c0_39, %c0_40], %82 {strides = array<i32>} : memref<1x1x8x128xf32, #tpu.memory_space<vmem>>, vector<1x1x1x128xf32>,
    %83 = arith.mulf %73, %73 : vector<288x128xf32>
    %cst_41 = arith.constant dense<0.000000e+00> : vector<128xf32>
    %84 = vector.multi_reduction <add>, %83, %cst_41 [0] : vector<288x128xf32> to vector<128xf32>
    %85 = vector.shape_cast %84 : vector<128xf32> to vector<1x128xf32>
    %c0_42 = arith.constant 0 : index
    %c0_43 = arith.constant 0 : index
    %c1 = arith.constant 1 : index
    %c0_44 = arith.constant 0 : index
    %86 = vector.load %arg5[%c0_42, %c0_43, %c1, %c0_44] : memref<1x1x8x128xf32, #tpu.memory_space<vmem>>, vector<1x1x1x128xf32>
    %87 = vector.shape_cast %86 : vector<1x1x1x128xf32> to vector<1x128xf32>
    %88 = vector.shape_cast %85 : vector<1x128xf32> to vector<1x1x1x128xf32>
    tpu.vector_store %arg5[%c0_42, %c0_43, %c1, %c0_44], %88 {strides = array<i32>} : memref<1x1x8x128xf32, #tpu.memory_space<vmem>>, vector<1x1x1x128xf32>,
    return
  }
  func.func @transform_0(%arg0: i32, %arg1: i32) -> (i32, i32, i32) {
    %c0_i32 = arith.constant 0 : i32
    %c0_i32_0 = arith.constant 0 : i32
    %c0_i32_1 = arith.constant 0 : i32
    return %arg0, %c0_i32, %c0_i32_0 : i32, i32, i32
  }
  func.func @transform_1(%arg0: i32, %arg1: i32) -> (i32, i32) {
    %c0_i32 = arith.constant 0 : i32
    %c0_i32_0 = arith.constant 0 : i32
    %c0_i32_1 = arith.constant 0 : i32
    return %c0_i32, %c0_i32_0 : i32, i32
  }
  func.func @transform_2(%arg0: i32, %arg1: i32) -> (i32, i32, i32) {
    %c0_i32 = arith.constant 0 : i32
    %c0_i32_0 = arith.constant 0 : i32
    %c0_i32_1 = arith.constant 0 : i32
    %c0_i32_2 = arith.constant 0 : i32
    return %c0_i32, %c0_i32_0, %c0_i32_1 : i32, i32, i32
  }
  func.func @transform_3(%arg0: i32, %arg1: i32) -> (i32, i32, i32, i32) {
    %c0_i32 = arith.constant 0 : i32
    %c0_i32_0 = arith.constant 0 : i32
    %c0_i32_1 = arith.constant 0 : i32
    return %arg0, %arg1, %c0_i32, %c0_i32_0 : i32, i32, i32, i32
  }
}

</mosaic_0001>

<llo_original>
// kernel: tpu_custom_call.1
$region0: #{tpu_custom_call.1}
  #allocation0 [shape = 'u32[]', space=smem, size = 0x4, offset = 0x4, fixed_abs, tag = 'smem constant byte address 0x4 - core index']
  #allocation1 [shape = 'u32[144,128]{1,0:T(1,128)}', space=vmem, size = 0x12000, scoped, tag = 'internal scratch']
  %s0 = inlined_call_operand.vmem [shape: f32[2,326,4], index: 0, kind: input, shape index: {}]
  %s1 = inlined_call_operand.vmem [shape: f32[36,128], index: 1, kind: input, shape index: {}]
  %s2 = inlined_call_operand.vmem [shape: f32[1,1,128], index: 2, kind: input, shape index: {}]
  %s3 = inlined_call_operand.hbm [shape: f32[2,1,8,128], index: 3, kind: output, shape index: {}]
  %s4 = sld [smem:[#allocation0]]
  $region45: #{tpu_custom_call.1} parent=0
    _
  %s6 = ssub.s32 1, %s4
  %s7 = scalar_select 0, %s6, %s4
  $region1: #{tpu_custom_call.1} parent=0
    #allocation2 [shape = 'u8[8192]{0}', space=vmem, size = 0x2000, scoped, tag = 'output window, operand 0']
    #allocation3 [shape = 's32[2]{0}', space=sflag, size = 0x8, scoped, tag = 'scoped memory for tpu_custom_call.1']
    %8 = vsyncpa [#allocation3], 0
    %s9 = scalar_lea.sflag [#allocation3], 1
    %10 = vsyncpa %s9, 0
    loop: start=0, step=1, limit=4
    $region2: #{tpu_custom_call.1} parent=1 // loop_pre_header
      _
    $region3: #{tpu_custom_call.1} parent=1 // loop_header
      %s12 = sphi 0, %s16
      %p13 = scmp.ge.s32.totalorder %s12, 4
      %s19 = sphi 0, %s31
      %s20 = sphi 0, %s27
      %s21 = sphi 0, %s19
      %s22 = sphi 0, %s20
      %s23 = sphi 0, %s21
      %s24 = sphi 0, %s22
      %s34 = sphi 0, %s36
      %s37 = sphi 0, %s34
      %s38 = sphi 0, %s37
      %s54 = sphi 0, %s38
      %s58 = sphi 0, %s58
      %s60 = sphi 0, %s58
      %s61 = sphi 0, %s60
      %s75 = sphi 0, %s61
      %s79 = sphi 0, %s79
      %s81 = sphi 0, %s79
      %s82 = sphi 0, %s81
      %s96 = sphi 0, %s82
      %s104 = sphi 0, %s106
      %s107 = sphi 0, %s104
      %s108 = sphi 0, %s107
      %s124 = sphi 0, %s108
    $region4: #{tpu_custom_call.1} parent=1 // loop_header_branch
      %15 = sbr.rel (%p13) target = $region8
    $region5: #{tpu_custom_call.1} parent=1 // loop_body
      %s17 = ssub.s32 %s12, 1
      %s18 = ssub.s32 %s12, 2
      %s25 = sadd.s32 1, %s20
      %p26 = scmp.ge.s32.totalorder %s25, 1
      %s27 = scalar_select %p26, 0, %s25
      %s28 = sadd.s32 1, %s19
      %s29 = scalar_select %p26, %s28, %s19
      %p30 = scmp.ge.s32.totalorder %s29, 2
      %s31 = scalar_select %p30, 0, %s29
      %s32 = ssub.s32 %s19, %s31
      %p33 = scmp.eq.s32.totalorder %s32, 0
      %s35 = sadd.s32 %s34, 1
      %s36 = scalar_select %p33, %s34, %s35
      %p39 = pneg %p33
      %p40 = scmp.eq.s32.totalorder %s12, 1
      %p41 = por %p39, %p40
      %p42 = scmp.ne.s32.totalorder %s34, %s37
      %p43 = scmp.eq.s32.totalorder %s12, 0
      %p44 = por %p42, %p43
      %p45 = scmp.ne.s32.totalorder %s34, %s37
      %p46 = scmp.eq.s32.totalorder %s17, 1
      %p47 = por %p45, %p46
      %p48 = scmp.ne.s32.totalorder %s37, %s38
      %p49 = scmp.eq.s32.totalorder %s17, 0
      %p50 = por %p48, %p49
      %p51 = scmp.ne.s32.totalorder %s37, %s38
      %p52 = scmp.eq.s32.totalorder %s18, 1
      %p53 = por %p51, %p52
      %p55 = scmp.ne.s32.totalorder %s38, %s54
      %p56 = scmp.eq.s32.totalorder %s18, 0
      %p57 = por %p55, %p56
      %s59 = sadd.s32 %s58, 1
      %p62 = scmp.eq.s32.totalorder %s12, 1
      %p63 = scmp.ne.s32.totalorder %s58, %s60
      %p64 = scmp.eq.s32.totalorder %s12, 0
      %p65 = por %p63, %p64
      %p66 = scmp.ne.s32.totalorder %s58, %s60
      %p67 = scmp.eq.s32.totalorder %s17, 1
      %p68 = por %p66, %p67
      %p69 = scmp.ne.s32.totalorder %s60, %s61
      %p70 = scmp.eq.s32.totalorder %s17, 0
      %p71 = por %p69, %p70
      %p72 = scmp.ne.s32.totalorder %s60, %s61
      %p73 = scmp.eq.s32.totalorder %s18, 1
      %p74 = por %p72, %p73
      %p76 = scmp.ne.s32.totalorder %s61, %s75
      %p77 = scmp.eq.s32.totalorder %s18, 0
      %p78 = por %p76, %p77
      %s80 = sadd.s32 %s79, 1
      %p83 = scmp.eq.s32.totalorder %s12, 1
      %p84 = scmp.ne.s32.totalorder %s79, %s81
      %p85 = scmp.eq.s32.totalorder %s12, 0
      %p86 = por %p84, %p85
      %p87 = scmp.ne.s32.totalorder %s79, %s81
      %p88 = scmp.eq.s32.totalorder %s17, 1
      %p89 = por %p87, %p88
      %p90 = scmp.ne.s32.totalorder %s81, %s82
      %p91 = scmp.eq.s32.totalorder %s17, 0
      %p92 = por %p90, %p91
      %p93 = scmp.ne.s32.totalorder %s81, %s82
      %p94 = scmp.eq.s32.totalorder %s18, 1
      %p95 = por %p93, %p94
      %p97 = scmp.ne.s32.totalorder %s82, %s96
      %p98 = scmp.eq.s32.totalorder %s18, 0
      %p99 = por %p97, %p98
      %s100 = ssub.s32 %s19, %s31
      %s101 = ssub.s32 %s20, %s27
      %s102 = sor.u32 %s100, %s101
      %p103 = scmp.eq.s32.totalorder %s102, 0
      %s105 = sadd.s32 %s104, 1
      %s106 = scalar_select %p103, %s104, %s105
      %p109 = pneg %p103
      %p110 = scmp.eq.s32.totalorder %s12, 1
      %p111 = por %p109, %p110
      %p112 = scmp.ne.s32.totalorder %s104, %s107
      %p113 = scmp.eq.s32.totalorder %s12, 0
      %p114 = por %p112, %p113
      %p115 = scmp.ne.s32.totalorder %s104, %s107
      %p116 = scmp.eq.s32.totalorder %s17, 1
      %p117 = por %p115, %p116
      %p118 = scmp.ne.s32.totalorder %s107, %s108
      %p119 = scmp.eq.s32.totalorder %s17, 0
      %p120 = por %p118, %p119
      %p121 = scmp.ne.s32.totalorder %s107, %s108
      %p122 = scmp.eq.s32.totalorder %s18, 1
      %p123 = por %p121, %p122
      %p125 = scmp.ne.s32.totalorder %s108, %s124
      %p126 = scmp.eq.s32.totalorder %s18, 0
      %p127 = por %p125, %p126
      %p128 = scmp.le.s32.totalorder 1, %s12
      %p129 = scmp.lt.s32.totalorder %s12, 3
      %p130 = pnand %p128, %p129
      %p131 = pneg %p130
      // Predicated region
      $region9: #{tpu_custom_call.1} parent=5 // pred_check
        _
      $region10: #{tpu_custom_call.1} parent=5 // pred_check_branch
        %133 = sbr.rel (%p130) target = $region12
      $region11: #{tpu_custom_call.1} parent=5 // pred_region
        %s134 = ssub.s32 %s12, 1
        // Predicated region
        $region13: #{tpu_custom_call.1} parent=11 // pred_check
          %p135 = pneg %p71
        $region14: #{tpu_custom_call.1} parent=11 // pred_check_branch
          %137 = sbr.rel (%p135) target = $region16
        $region15: #{tpu_custom_call.1} parent=11 // pred_region
          _
        $region16: #{tpu_custom_call.1} parent=11 // pred_fallthru
          _
        // Predicated region
        $region17: #{tpu_custom_call.1} parent=11 // pred_check
          %p138 = pneg %p92
        $region18: #{tpu_custom_call.1} parent=11 // pred_check_branch
          %140 = sbr.rel (%p138) target = $region20
        $region19: #{tpu_custom_call.1} parent=11 // pred_region
          _
        $region20: #{tpu_custom_call.1} parent=11 // pred_fallthru
          _
      $region12: #{tpu_custom_call.1} parent=5 // pred_fallthru
        _
      %p141 = scmp.lt.s32.totalorder %s12, 2
      // Predicated region
      $region21: #{tpu_custom_call.1} parent=5 // pred_check
        %p142 = pneg %p141
      $region22: #{tpu_custom_call.1} parent=5 // pred_check_branch
        %144 = sbr.rel (%p142) target = $region24
      $region23: #{tpu_custom_call.1} parent=5 // pred_region
        // Predicated region
        $region25: #{tpu_custom_call.1} parent=23 // pred_check
          %p145 = pneg %p44
        $region26: #{tpu_custom_call.1} parent=23 // pred_check_branch
          %147 = sbr.rel (%p145) target = $region28
        $region27: #{tpu_custom_call.1} parent=23 // pred_region
          %p148 = scmp.lt.s32.totalorder %s19, 1
          %s149 = scalar_select %p148, %s19, 1
          %s150 = smul.addr %s149, 41
          %s151 = smul.addr %s150, 8
          %s152 = scalar_lea.vmem %s0, %s151
        $region28: #{tpu_custom_call.1} parent=23 // pred_fallthru
          _
      $region24: #{tpu_custom_call.1} parent=5 // pred_fallthru
        _
      %p153 = scmp.le.s32.totalorder 1, %s12
      %p154 = scmp.lt.s32.totalorder %s12, 3
      %p155 = pnand %p153, %p154
      %p156 = pneg %p155
      // Predicated region
      $region29: #{tpu_custom_call.1} parent=5 // pred_check
        _
      $region30: #{tpu_custom_call.1} parent=5 // pred_check_branch
        %158 = sbr.rel (%p155) target = $region32
      $region31: #{tpu_custom_call.1} parent=5 // pred_region
        %s159 = ssub.s32 %s12, 1
        %p160 = scmp.lt.s32.totalorder %s21, 1
        %s161 = scalar_select %p160, %s21, 1
        %s162 = smul.addr %s161, 41
        %s163 = smul.addr %s162, 8
        %s164 = scalar_lea.vmem %s0, %s163
        %p165 = pneg %p50
        %p166 = pneg %p47
        %p167 = pneg %p71
        %p168 = pneg %p68
        %p169 = pneg %p92
        %p170 = pneg %p89
        %p171 = pneg %p120
        %p172 = pneg %p117
        %s173 = sand.u32 %s107, 1
        %s174 = scalar_lea.sflag [#allocation3], %s173
        %s175 = sand.u32 %s107, 1
        %s176 = smul.addr %s175, 8
        %s177 = scalar_lea.vmem [#allocation2], %s176
        %p178 = scmp.lt.s32.totalorder %s21, 1
        %s179 = scalar_select %p178, %s21, 1
        %s180 = smul.addr %s179, 41
        %s181 = smul.addr %s180, 8
        %s182 = scalar_lea.vmem %s0, %s181
        %s183 = smul.u32 %s22, 288
        %s184 = scalar_lea.vmem %s182, %s183
        %v185 = vld [vmem:[%s184] sm:$0xff]
        %v186 = vld [vmem:[%s184 + $0x8] sm:$0xff]
        %v187 = vld [vmem:[%s184 + $0x10] sm:$0xff]
        %v188 = vld [vmem:[%s184 + $0x18] sm:$0xff]
        %v189 = vld [vmem:[%s184 + $0x20] sm:$0xff]
        %v190 = vld [vmem:[%s184 + $0x28] sm:$0xff]
        %v191 = vld [vmem:[%s184 + $0x30] sm:$0xff]
        %v192 = vld [vmem:[%s184 + $0x38] sm:$0xff]
        %v193 = vld [vmem:[%s184 + $0x40] sm:$0xff]
        %v194 = vld [vmem:[%s184 + $0x48] sm:$0xff]
        %v195 = vld [vmem:[%s184 + $0x50] sm:$0xff]
        %v196 = vld [vmem:[%s184 + $0x58] sm:$0xff]
        %v197 = vld [vmem:[%s184 + $0x60] sm:$0xff]
        %v198 = vld [vmem:[%s184 + $0x68] sm:$0xff]
        %v199 = vld [vmem:[%s184 + $0x70] sm:$0xff]
        %v200 = vld [vmem:[%s184 + $0x78] sm:$0xff]
        %v201 = vld [vmem:[%s184 + $0x80] sm:$0xff]
        %v202 = vld [vmem:[%s184 + $0x88] sm:$0xff]
        %v203 = vld [vmem:[%s184 + $0x90] sm:$0xff]
        %v204 = vld [vmem:[%s184 + $0x98] sm:$0xff]
        %v205 = vld [vmem:[%s184 + $0xa0] sm:$0xff]
        %v206 = vld [vmem:[%s184 + $0xa8] sm:$0xff]
        %v207 = vld [vmem:[%s184 + $0xb0] sm:$0xff]
        %v208 = vld [vmem:[%s184 + $0xb8] sm:$0xff]
        %v209 = vld [vmem:[%s184 + $0xc0] sm:$0xff]
        %v210 = vld [vmem:[%s184 + $0xc8] sm:$0xff]
        %v211 = vld [vmem:[%s184 + $0xd0] sm:$0xff]
        %v212 = vld [vmem:[%s184 + $0xd8] sm:$0xff]
        %v213 = vld [vmem:[%s184 + $0xe0] sm:$0xff]
        %v214 = vld [vmem:[%s184 + $0xe8] sm:$0xff]
        %v215 = vld [vmem:[%s184 + $0xf0] sm:$0xff]
        %v216 = vld [vmem:[%s184 + $0xf8] sm:$0xff]
        %v217 = vld [vmem:[%s184 + $0x100] sm:$0xff]
        %v218 = vld [vmem:[%s184 + $0x108] sm:$0xff]
        %v219 = vld [vmem:[%s184 + $0x110] sm:$0xff]
        %v220 = vld [vmem:[%s184 + $0x118] sm:$0xff]
        %s221 = sadd.s32 %s183, 1
        %s222 = scalar_lea.vmem %s182, %s221
        %v223 = vld [vmem:[%s222] sm:$0xff]
        %v224 = vld [vmem:[%s222 + $0x8] sm:$0xff]
        %v225 = vld [vmem:[%s222 + $0x10] sm:$0xff]
        %v226 = vld [vmem:[%s222 + $0x18] sm:$0xff]
        %v227 = vld [vmem:[%s222 + $0x20] sm:$0xff]
        %v228 = vld [vmem:[%s222 + $0x28] sm:$0xff]
        %v229 = vld [vmem:[%s222 + $0x30] sm:$0xff]
        %v230 = vld [vmem:[%s222 + $0x38] sm:$0xff]
        %v231 = vld [vmem:[%s222 + $0x40] sm:$0xff]
        %v232 = vld [vmem:[%s222 + $0x48] sm:$0xff]
        %v233 = vld [vmem:[%s222 + $0x50] sm:$0xff]
        %v234 = vld [vmem:[%s222 + $0x58] sm:$0xff]
        %v235 = vld [vmem:[%s222 + $0x60] sm:$0xff]
        %v236 = vld [vmem:[%s222 + $0x68] sm:$0xff]
        %v237 = vld [vmem:[%s222 + $0x70] sm:$0xff]
        %v238 = vld [vmem:[%s222 + $0x78] sm:$0xff]
        %v239 = vld [vmem:[%s222 + $0x80] sm:$0xff]
        %v240 = vld [vmem:[%s222 + $0x88] sm:$0xff]
        %v241 = vld [vmem:[%s222 + $0x90] sm:$0xff]
        %v242 = vld [vmem:[%s222 + $0x98] sm:$0xff]
        %v243 = vld [vmem:[%s222 + $0xa0] sm:$0xff]
        %v244 = vld [vmem:[%s222 + $0xa8] sm:$0xff]
        %v245 = vld [vmem:[%s222 + $0xb0] sm:$0xff]
        %v246 = vld [vmem:[%s222 + $0xb8] sm:$0xff]
        %v247 = vld [vmem:[%s222 + $0xc0] sm:$0xff]
        %v248 = vld [vmem:[%s222 + $0xc8] sm:$0xff]
        %v249 = vld [vmem:[%s222 + $0xd0] sm:$0xff]
        %v250 = vld [vmem:[%s222 + $0xd8] sm:$0xff]
        %v251 = vld [vmem:[%s222 + $0xe0] sm:$0xff]
        %v252 = vld [vmem:[%s222 + $0xe8] sm:$0xff]
        %v253 = vld [vmem:[%s222 + $0xf0] sm:$0xff]
        %v254 = vld [vmem:[%s222 + $0xf8] sm:$0xff]
        %v255 = vld [vmem:[%s222 + $0x100] sm:$0xff]
        %v256 = vld [vmem:[%s222 + $0x108] sm:$0xff]
        %v257 = vld [vmem:[%s222 + $0x110] sm:$0xff]
        %v258 = vld [vmem:[%s222 + $0x118] sm:$0xff]
        %s259 = sadd.s32 %s183, 2
        %s260 = scalar_lea.vmem %s182, %s259
        %v261 = vld [vmem:[%s260] sm:$0xff]
        %v262 = vld [vmem:[%s260 + $0x8] sm:$0xff]
        %v263 = vld [vmem:[%s260 + $0x10] sm:$0xff]
        %v264 = vld [vmem:[%s260 + $0x18] sm:$0xff]
        %v265 = vld [vmem:[%s260 + $0x20] sm:$0xff]
        %v266 = vld [vmem:[%s260 + $0x28] sm:$0xff]
        %v267 = vld [vmem:[%s260 + $0x30] sm:$0xff]
        %v268 = vld [vmem:[%s260 + $0x38] sm:$0xff]
        %v269 = vld [vmem:[%s260 + $0x40] sm:$0xff]
        %v270 = vld [vmem:[%s260 + $0x48] sm:$0xff]
        %v271 = vld [vmem:[%s260 + $0x50] sm:$0xff]
        %v272 = vld [vmem:[%s260 + $0x58] sm:$0xff]
        %v273 = vld [vmem:[%s260 + $0x60] sm:$0xff]
        %v274 = vld [vmem:[%s260 + $0x68] sm:$0xff]
        %v275 = vld [vmem:[%s260 + $0x70] sm:$0xff]
        %v276 = vld [vmem:[%s260 + $0x78] sm:$0xff]
        %v277 = vld [vmem:[%s260 + $0x80] sm:$0xff]
        %v278 = vld [vmem:[%s260 + $0x88] sm:$0xff]
        %v279 = vld [vmem:[%s260 + $0x90] sm:$0xff]
        %v280 = vld [vmem:[%s260 + $0x98] sm:$0xff]
        %v281 = vld [vmem:[%s260 + $0xa0] sm:$0xff]
        %v282 = vld [vmem:[%s260 + $0xa8] sm:$0xff]
        %v283 = vld [vmem:[%s260 + $0xb0] sm:$0xff]
        %v284 = vld [vmem:[%s260 + $0xb8] sm:$0xff]
        %v285 = vld [vmem:[%s260 + $0xc0] sm:$0xff]
        %v286 = vld [vmem:[%s260 + $0xc8] sm:$0xff]
        %v287 = vld [vmem:[%s260 + $0xd0] sm:$0xff]
        %v288 = vld [vmem:[%s260 + $0xd8] sm:$0xff]
        %v289 = vld [vmem:[%s260 + $0xe0] sm:$0xff]
        %v290 = vld [vmem:[%s260 + $0xe8] sm:$0xff]
        %v291 = vld [vmem:[%s260 + $0xf0] sm:$0xff]
        %v292 = vld [vmem:[%s260 + $0xf8] sm:$0xff]
        %v293 = vld [vmem:[%s260 + $0x100] sm:$0xff]
        %v294 = vld [vmem:[%s260 + $0x108] sm:$0xff]
        %v295 = vld [vmem:[%s260 + $0x110] sm:$0xff]
        %v296 = vld [vmem:[%s260 + $0x118] sm:$0xff]
        %s297 = sadd.s32 %s183, 18
        %s298 = scalar_lea.vmem %s182, %s297
        %v299 = vld [vmem:[%s298] sm:$0xff]
        %v300 = vld [vmem:[%s298 + $0x8] sm:$0xff]
        %v301 = vld [vmem:[%s298 + $0x10] sm:$0xff]
        %v302 = vld [vmem:[%s298 + $0x18] sm:$0xff]
        %v303 = vld [vmem:[%s298 + $0x20] sm:$0xff]
        %v304 = vld [vmem:[%s298 + $0x28] sm:$0xff]
        %v305 = vld [vmem:[%s298 + $0x30] sm:$0xff]
        %v306 = vld [vmem:[%s298 + $0x38] sm:$0xff]
        %v307 = vld [vmem:[%s298 + $0x40] sm:$0xff]
        %v308 = vld [vmem:[%s298 + $0x48] sm:$0xff]
        %v309 = vld [vmem:[%s298 + $0x50] sm:$0xff]
        %v310 = vld [vmem:[%s298 + $0x58] sm:$0xff]
        %v311 = vld [vmem:[%s298 + $0x60] sm:$0xff]
        %v312 = vld [vmem:[%s298 + $0x68] sm:$0xff]
        %v313 = vld [vmem:[%s298 + $0x70] sm:$0xff]
        %v314 = vld [vmem:[%s298 + $0x78] sm:$0xff]
        %v315 = vld [vmem:[%s298 + $0x80] sm:$0xff]
        %v316 = vld [vmem:[%s298 + $0x88] sm:$0xff]
        %v317 = vld [vmem:[%s298 + $0x90] sm:$0xff]
        %v318 = vld [vmem:[%s298 + $0x98] sm:$0xff]
        %v319 = vld [vmem:[%s298 + $0xa0] sm:$0xff]
        %v320 = vld [vmem:[%s298 + $0xa8] sm:$0xff]
        %v321 = vld [vmem:[%s298 + $0xb0] sm:$0xff]
        %v322 = vld [vmem:[%s298 + $0xb8] sm:$0xff]
        %v323 = vld [vmem:[%s298 + $0xc0] sm:$0xff]
        %v324 = vld [vmem:[%s298 + $0xc8] sm:$0xff]
        %v325 = vld [vmem:[%s298 + $0xd0] sm:$0xff]
        %v326 = vld [vmem:[%s298 + $0xd8] sm:$0xff]
        %v327 = vld [vmem:[%s298 + $0xe0] sm:$0xff]
        %v328 = vld [vmem:[%s298 + $0xe8] sm:$0xff]
        %v329 = vld [vmem:[%s298 + $0xf0] sm:$0xff]
        %v330 = vld [vmem:[%s298 + $0xf8] sm:$0xff]
        %v331 = vld [vmem:[%s298 + $0x100] sm:$0xff]
        %v332 = vld [vmem:[%s298 + $0x108] sm:$0xff]
        %v333 = vld [vmem:[%s298 + $0x110] sm:$0xff]
        %v334 = vld [vmem:[%s298 + $0x118] sm:$0xff]
        %s335 = sadd.s32 %s183, 19
        %s336 = scalar_lea.vmem %s182, %s335
        %v337 = vld [vmem:[%s336] sm:$0xff]
        %v338 = vld [vmem:[%s336 + $0x8] sm:$0xff]
        %v339 = vld [vmem:[%s336 + $0x10] sm:$0xff]
        %v340 = vld [vmem:[%s336 + $0x18] sm:$0xff]
        %v341 = vld [vmem:[%s336 + $0x20] sm:$0xff]
        %v342 = vld [vmem:[%s336 + $0x28] sm:$0xff]
        %v343 = vld [vmem:[%s336 + $0x30] sm:$0xff]
        %v344 = vld [vmem:[%s336 + $0x38] sm:$0xff]
        %v345 = vld [vmem:[%s336 + $0x40] sm:$0xff]
        %v346 = vld [vmem:[%s336 + $0x48] sm:$0xff]
        %v347 = vld [vmem:[%s336 + $0x50] sm:$0xff]
        %v348 = vld [vmem:[%s336 + $0x58] sm:$0xff]
        %v349 = vld [vmem:[%s336 + $0x60] sm:$0xff]
        %v350 = vld [vmem:[%s336 + $0x68] sm:$0xff]
        %v351 = vld [vmem:[%s336 + $0x70] sm:$0xff]
        %v352 = vld [vmem:[%s336 + $0x78] sm:$0xff]
        %v353 = vld [vmem:[%s336 + $0x80] sm:$0xff]
        %v354 = vld [vmem:[%s336 + $0x88] sm:$0xff]
        %v355 = vld [vmem:[%s336 + $0x90] sm:$0xff]
        %v356 = vld [vmem:[%s336 + $0x98] sm:$0xff]
        %v357 = vld [vmem:[%s336 + $0xa0] sm:$0xff]
        %v358 = vld [vmem:[%s336 + $0xa8] sm:$0xff]
        %v359 = vld [vmem:[%s336 + $0xb0] sm:$0xff]
        %v360 = vld [vmem:[%s336 + $0xb8] sm:$0xff]
        %v361 = vld [vmem:[%s336 + $0xc0] sm:$0xff]
        %v362 = vld [vmem:[%s336 + $0xc8] sm:$0xff]
        %v363 = vld [vmem:[%s336 + $0xd0] sm:$0xff]
        %v364 = vld [vmem:[%s336 + $0xd8] sm:$0xff]
        %v365 = vld [vmem:[%s336 + $0xe0] sm:$0xff]
        %v366 = vld [vmem:[%s336 + $0xe8] sm:$0xff]
        %v367 = vld [vmem:[%s336 + $0xf0] sm:$0xff]
        %v368 = vld [vmem:[%s336 + $0xf8] sm:$0xff]
        %v369 = vld [vmem:[%s336 + $0x100] sm:$0xff]
        %v370 = vld [vmem:[%s336 + $0x108] sm:$0xff]
        %v371 = vld [vmem:[%s336 + $0x110] sm:$0xff]
        %v372 = vld [vmem:[%s336 + $0x118] sm:$0xff]
        %s373 = sadd.s32 %s183, 20
        %s374 = scalar_lea.vmem %s182, %s373
        %v375 = vld [vmem:[%s374] sm:$0xff]
        %v376 = vld [vmem:[%s374 + $0x8] sm:$0xff]
        %v377 = vld [vmem:[%s374 + $0x10] sm:$0xff]
        %v378 = vld [vmem:[%s374 + $0x18] sm:$0xff]
        %v379 = vld [vmem:[%s374 + $0x20] sm:$0xff]
        %v380 = vld [vmem:[%s374 + $0x28] sm:$0xff]
        %v381 = vld [vmem:[%s374 + $0x30] sm:$0xff]
        %v382 = vld [vmem:[%s374 + $0x38] sm:$0xff]
        %v383 = vld [vmem:[%s374 + $0x40] sm:$0xff]
        %v384 = vld [vmem:[%s374 + $0x48] sm:$0xff]
        %v385 = vld [vmem:[%s374 + $0x50] sm:$0xff]
        %v386 = vld [vmem:[%s374 + $0x58] sm:$0xff]
        %v387 = vld [vmem:[%s374 + $0x60] sm:$0xff]
        %v388 = vld [vmem:[%s374 + $0x68] sm:$0xff]
        %v389 = vld [vmem:[%s374 + $0x70] sm:$0xff]
        %v390 = vld [vmem:[%s374 + $0x78] sm:$0xff]
        %v391 = vld [vmem:[%s374 + $0x80] sm:$0xff]
        %v392 = vld [vmem:[%s374 + $0x88] sm:$0xff]
        %v393 = vld [vmem:[%s374 + $0x90] sm:$0xff]
        %v394 = vld [vmem:[%s374 + $0x98] sm:$0xff]
        %v395 = vld [vmem:[%s374 + $0xa0] sm:$0xff]
        %v396 = vld [vmem:[%s374 + $0xa8] sm:$0xff]
        %v397 = vld [vmem:[%s374 + $0xb0] sm:$0xff]
        %v398 = vld [vmem:[%s374 + $0xb8] sm:$0xff]
        %v399 = vld [vmem:[%s374 + $0xc0] sm:$0xff]
        %v400 = vld [vmem:[%s374 + $0xc8] sm:$0xff]
        %v401 = vld [vmem:[%s374 + $0xd0] sm:$0xff]
        %v402 = vld [vmem:[%s374 + $0xd8] sm:$0xff]
        %v403 = vld [vmem:[%s374 + $0xe0] sm:$0xff]
        %v404 = vld [vmem:[%s374 + $0xe8] sm:$0xff]
        %v405 = vld [vmem:[%s374 + $0xf0] sm:$0xff]
        %v406 = vld [vmem:[%s374 + $0xf8] sm:$0xff]
        %v407 = vld [vmem:[%s374 + $0x100] sm:$0xff]
        %v408 = vld [vmem:[%s374 + $0x108] sm:$0xff]
        %v409 = vld [vmem:[%s374 + $0x110] sm:$0xff]
        %v410 = vld [vmem:[%s374 + $0x118] sm:$0xff]
        %s411 = sadd.s32 %s183, 36
        %s412 = scalar_lea.vmem %s182, %s411
        %v413 = vld [vmem:[%s412] sm:$0xff]
        %v414 = vld [vmem:[%s412 + $0x8] sm:$0xff]
        %v415 = vld [vmem:[%s412 + $0x10] sm:$0xff]
        %v416 = vld [vmem:[%s412 + $0x18] sm:$0xff]
        %v417 = vld [vmem:[%s412 + $0x20] sm:$0xff]
        %v418 = vld [vmem:[%s412 + $0x28] sm:$0xff]
        %v419 = vld [vmem:[%s412 + $0x30] sm:$0xff]
        %v420 = vld [vmem:[%s412 + $0x38] sm:$0xff]
        %v421 = vld [vmem:[%s412 + $0x40] sm:$0xff]
        %v422 = vld [vmem:[%s412 + $0x48] sm:$0xff]
        %v423 = vld [vmem:[%s412 + $0x50] sm:$0xff]
        %v424 = vld [vmem:[%s412 + $0x58] sm:$0xff]
        %v425 = vld [vmem:[%s412 + $0x60] sm:$0xff]
        %v426 = vld [vmem:[%s412 + $0x68] sm:$0xff]
        %v427 = vld [vmem:[%s412 + $0x70] sm:$0xff]
        %v428 = vld [vmem:[%s412 + $0x78] sm:$0xff]
        %v429 = vld [vmem:[%s412 + $0x80] sm:$0xff]
        %v430 = vld [vmem:[%s412 + $0x88] sm:$0xff]
        %v431 = vld [vmem:[%s412 + $0x90] sm:$0xff]
        %v432 = vld [vmem:[%s412 + $0x98] sm:$0xff]
        %v433 = vld [vmem:[%s412 + $0xa0] sm:$0xff]
        %v434 = vld [vmem:[%s412 + $0xa8] sm:$0xff]
        %v435 = vld [vmem:[%s412 + $0xb0] sm:$0xff]
        %v436 = vld [vmem:[%s412 + $0xb8] sm:$0xff]
        %v437 = vld [vmem:[%s412 + $0xc0] sm:$0xff]
        %v438 = vld [vmem:[%s412 + $0xc8] sm:$0xff]
        %v439 = vld [vmem:[%s412 + $0xd0] sm:$0xff]
        %v440 = vld [vmem:[%s412 + $0xd8] sm:$0xff]
        %v441 = vld [vmem:[%s412 + $0xe0] sm:$0xff]
        %v442 = vld [vmem:[%s412 + $0xe8] sm:$0xff]
        %v443 = vld [vmem:[%s412 + $0xf0] sm:$0xff]
        %v444 = vld [vmem:[%s412 + $0xf8] sm:$0xff]
        %v445 = vld [vmem:[%s412 + $0x100] sm:$0xff]
        %v446 = vld [vmem:[%s412 + $0x108] sm:$0xff]
        %v447 = vld [vmem:[%s412 + $0x110] sm:$0xff]
        %v448 = vld [vmem:[%s412 + $0x118] sm:$0xff]
        %s449 = sadd.s32 %s183, 37
        %s450 = scalar_lea.vmem %s182, %s449
        %v451 = vld [vmem:[%s450] sm:$0xff]
        %v452 = vld [vmem:[%s450 + $0x8] sm:$0xff]
        %v453 = vld [vmem:[%s450 + $0x10] sm:$0xff]
        %v454 = vld [vmem:[%s450 + $0x18] sm:$0xff]
        %v455 = vld [vmem:[%s450 + $0x20] sm:$0xff]
        %v456 = vld [vmem:[%s450 + $0x28] sm:$0xff]
        %v457 = vld [vmem:[%s450 + $0x30] sm:$0xff]
        %v458 = vld [vmem:[%s450 + $0x38] sm:$0xff]
        %v459 = vld [vmem:[%s450 + $0x40] sm:$0xff]
        %v460 = vld [vmem:[%s450 + $0x48] sm:$0xff]
        %v461 = vld [vmem:[%s450 + $0x50] sm:$0xff]
        %v462 = vld [vmem:[%s450 + $0x58] sm:$0xff]
        %v463 = vld [vmem:[%s450 + $0x60] sm:$0xff]
        %v464 = vld [vmem:[%s450 + $0x68] sm:$0xff]
        %v465 = vld [vmem:[%s450 + $0x70] sm:$0xff]
        %v466 = vld [vmem:[%s450 + $0x78] sm:$0xff]
        %v467 = vld [vmem:[%s450 + $0x80] sm:$0xff]
        %v468 = vld [vmem:[%s450 + $0x88] sm:$0xff]
        %v469 = vld [vmem:[%s450 + $0x90] sm:$0xff]
        %v470 = vld [vmem:[%s450 + $0x98] sm:$0xff]
        %v471 = vld [vmem:[%s450 + $0xa0] sm:$0xff]
        %v472 = vld [vmem:[%s450 + $0xa8] sm:$0xff]
        %v473 = vld [vmem:[%s450 + $0xb0] sm:$0xff]
        %v474 = vld [vmem:[%s450 + $0xb8] sm:$0xff]
        %v475 = vld [vmem:[%s450 + $0xc0] sm:$0xff]
        %v476 = vld [vmem:[%s450 + $0xc8] sm:$0xff]
        %v477 = vld [vmem:[%s450 + $0xd0] sm:$0xff]
        %v478 = vld [vmem:[%s450 + $0xd8] sm:$0xff]
        %v479 = vld [vmem:[%s450 + $0xe0] sm:$0xff]
        %v480 = vld [vmem:[%s450 + $0xe8] sm:$0xff]
        %v481 = vld [vmem:[%s450 + $0xf0] sm:$0xff]
        %v482 = vld [vmem:[%s450 + $0xf8] sm:$0xff]
        %v483 = vld [vmem:[%s450 + $0x100] sm:$0xff]
        %v484 = vld [vmem:[%s450 + $0x108] sm:$0xff]
        %v485 = vld [vmem:[%s450 + $0x110] sm:$0xff]
        %v486 = vld [vmem:[%s450 + $0x118] sm:$0xff]
        %s487 = sadd.s32 %s183, 38
        %s488 = scalar_lea.vmem %s182, %s487
        %v489 = vld [vmem:[%s488] sm:$0xff]
        %v490 = vld [vmem:[%s488 + $0x8] sm:$0xff]
        %v491 = vld [vmem:[%s488 + $0x10] sm:$0xff]
        %v492 = vld [vmem:[%s488 + $0x18] sm:$0xff]
        %v493 = vld [vmem:[%s488 + $0x20] sm:$0xff]
        %v494 = vld [vmem:[%s488 + $0x28] sm:$0xff]
        %v495 = vld [vmem:[%s488 + $0x30] sm:$0xff]
        %v496 = vld [vmem:[%s488 + $0x38] sm:$0xff]
        %v497 = vld [vmem:[%s488 + $0x40] sm:$0xff]
        %v498 = vld [vmem:[%s488 + $0x48] sm:$0xff]
        %v499 = vld [vmem:[%s488 + $0x50] sm:$0xff]
        %v500 = vld [vmem:[%s488 + $0x58] sm:$0xff]
        %v501 = vld [vmem:[%s488 + $0x60] sm:$0xff]
        %v502 = vld [vmem:[%s488 + $0x68] sm:$0xff]
        %v503 = vld [vmem:[%s488 + $0x70] sm:$0xff]
        %v504 = vld [vmem:[%s488 + $0x78] sm:$0xff]
        %v505 = vld [vmem:[%s488 + $0x80] sm:$0xff]
        %v506 = vld [vmem:[%s488 + $0x88] sm:$0xff]
        %v507 = vld [vmem:[%s488 + $0x90] sm:$0xff]
        %v508 = vld [vmem:[%s488 + $0x98] sm:$0xff]
        %v509 = vld [vmem:[%s488 + $0xa0] sm:$0xff]
        %v510 = vld [vmem:[%s488 + $0xa8] sm:$0xff]
        %v511 = vld [vmem:[%s488 + $0xb0] sm:$0xff]
        %v512 = vld [vmem:[%s488 + $0xb8] sm:$0xff]
        %v513 = vld [vmem:[%s488 + $0xc0] sm:$0xff]
        %v514 = vld [vmem:[%s488 + $0xc8] sm:$0xff]
        %v515 = vld [vmem:[%s488 + $0xd0] sm:$0xff]
        %v516 = vld [vmem:[%s488 + $0xd8] sm:$0xff]
        %v517 = vld [vmem:[%s488 + $0xe0] sm:$0xff]
        %v518 = vld [vmem:[%s488 + $0xe8] sm:$0xff]
        %v519 = vld [vmem:[%s488 + $0xf0] sm:$0xff]
        %v520 = vld [vmem:[%s488 + $0xf8] sm:$0xff]
        %v521 = vld [vmem:[%s488 + $0x100] sm:$0xff]
        %v522 = vld [vmem:[%s488 + $0x108] sm:$0xff]
        %v523 = vld [vmem:[%s488 + $0x110] sm:$0xff]
        %v524 = vld [vmem:[%s488 + $0x118] sm:$0xff]
        %561 = vrot.lane.b32.xlu0 %v223, 4
        %v562 = vpop.permute.xlu0 %561
        %563 = vrot.lane.b32.xlu0 %v224, 4
        %v564 = vpop.permute.xlu0 %563
        %565 = vrot.lane.b32.xlu0 %v225, 4
        %v566 = vpop.permute.xlu0 %565
        %567 = vrot.lane.b32.xlu0 %v226, 4
        %v568 = vpop.permute.xlu0 %567
        %569 = vrot.lane.b32.xlu0 %v227, 4
        %v570 = vpop.permute.xlu0 %569
        %571 = vrot.lane.b32.xlu0 %v228, 4
        %v572 = vpop.permute.xlu0 %571
        %573 = vrot.lane.b32.xlu0 %v229, 4
        %v574 = vpop.permute.xlu0 %573
        %575 = vrot.lane.b32.xlu0 %v230, 4
        %v576 = vpop.permute.xlu0 %575
        %577 = vrot.lane.b32.xlu0 %v231, 4
        %v578 = vpop.permute.xlu0 %577
        %579 = vrot.lane.b32.xlu0 %v232, 4
        %v580 = vpop.permute.xlu0 %579
        %581 = vrot.lane.b32.xlu0 %v233, 4
        %v582 = vpop.permute.xlu0 %581
        %583 = vrot.lane.b32.xlu0 %v234, 4
        %v584 = vpop.permute.xlu0 %583
        %585 = vrot.lane.b32.xlu0 %v235, 4
        %v586 = vpop.permute.xlu0 %585
        %587 = vrot.lane.b32.xlu0 %v236, 4
        %v588 = vpop.permute.xlu0 %587
        %589 = vrot.lane.b32.xlu0 %v237, 4
        %v590 = vpop.permute.xlu0 %589
        %591 = vrot.lane.b32.xlu0 %v238, 4
        %v592 = vpop.permute.xlu0 %591
        %593 = vrot.lane.b32.xlu0 %v239, 4
        %v594 = vpop.permute.xlu0 %593
        %595 = vrot.lane.b32.xlu0 %v240, 4
        %v596 = vpop.permute.xlu0 %595
        %597 = vrot.lane.b32.xlu0 %v241, 4
        %v598 = vpop.permute.xlu0 %597
        %599 = vrot.lane.b32.xlu0 %v242, 4
        %v600 = vpop.permute.xlu0 %599
        %601 = vrot.lane.b32.xlu0 %v243, 4
        %v602 = vpop.permute.xlu0 %601
        %603 = vrot.lane.b32.xlu0 %v244, 4
        %v604 = vpop.permute.xlu0 %603
        %605 = vrot.lane.b32.xlu0 %v245, 4
        %v606 = vpop.permute.xlu0 %605
        %607 = vrot.lane.b32.xlu0 %v246, 4
        %v608 = vpop.permute.xlu0 %607
        %609 = vrot.lane.b32.xlu0 %v247, 4
        %v610 = vpop.permute.xlu0 %609
        %611 = vrot.lane.b32.xlu0 %v248, 4
        %v612 = vpop.permute.xlu0 %611
        %613 = vrot.lane.b32.xlu0 %v249, 4
        %v614 = vpop.permute.xlu0 %613
        %615 = vrot.lane.b32.xlu0 %v250, 4
        %v616 = vpop.permute.xlu0 %615
        %617 = vrot.lane.b32.xlu0 %v251, 4
        %v618 = vpop.permute.xlu0 %617
        %619 = vrot.lane.b32.xlu0 %v252, 4
        %v620 = vpop.permute.xlu0 %619
        %621 = vrot.lane.b32.xlu0 %v253, 4
        %v622 = vpop.permute.xlu0 %621
        %623 = vrot.lane.b32.xlu0 %v254, 4
        %v624 = vpop.permute.xlu0 %623
        %625 = vrot.lane.b32.xlu0 %v255, 4
        %v626 = vpop.permute.xlu0 %625
        %627 = vrot.lane.b32.xlu0 %v256, 4
        %v628 = vpop.permute.xlu0 %627
        %629 = vrot.lane.b32.xlu0 %v257, 4
        %v630 = vpop.permute.xlu0 %629
        %631 = vrot.lane.b32.xlu0 %v258, 4
        %v632 = vpop.permute.xlu0 %631
        %705 = vrot.lane.b32.xlu0 %v261, 8
        %v706 = vpop.permute.xlu0 %705
        %707 = vrot.lane.b32.xlu0 %v262, 8
        %v708 = vpop.permute.xlu0 %707
        %709 = vrot.lane.b32.xlu0 %v263, 8
        %v710 = vpop.permute.xlu0 %709
        %711 = vrot.lane.b32.xlu0 %v264, 8
        %v712 = vpop.permute.xlu0 %711
        %713 = vrot.lane.b32.xlu0 %v265, 8
        %v714 = vpop.permute.xlu0 %713
        %715 = vrot.lane.b32.xlu0 %v266, 8
        %v716 = vpop.permute.xlu0 %715
        %717 = vrot.lane.b32.xlu0 %v267, 8
        %v718 = vpop.permute.xlu0 %717
        %719 = vrot.lane.b32.xlu0 %v268, 8
        %v720 = vpop.permute.xlu0 %719
        %721 = vrot.lane.b32.xlu0 %v269, 8
        %v722 = vpop.permute.xlu0 %721
        %723 = vrot.lane.b32.xlu0 %v270, 8
        %v724 = vpop.permute.xlu0 %723
        %725 = vrot.lane.b32.xlu0 %v271, 8
        %v726 = vpop.permute.xlu0 %725
        %727 = vrot.lane.b32.xlu0 %v272, 8
        %v728 = vpop.permute.xlu0 %727
        %729 = vrot.lane.b32.xlu0 %v273, 8
        %v730 = vpop.permute.xlu0 %729
        %731 = vrot.lane.b32.xlu0 %v274, 8
        %v732 = vpop.permute.xlu0 %731
        %733 = vrot.lane.b32.xlu0 %v275, 8
        %v734 = vpop.permute.xlu0 %733
        %735 = vrot.lane.b32.xlu0 %v276, 8
        %v736 = vpop.permute.xlu0 %735
        %737 = vrot.lane.b32.xlu0 %v277, 8
        %v738 = vpop.permute.xlu0 %737
        %739 = vrot.lane.b32.xlu0 %v278, 8
        %v740 = vpop.permute.xlu0 %739
        %741 = vrot.lane.b32.xlu0 %v279, 8
        %v742 = vpop.permute.xlu0 %741
        %743 = vrot.lane.b32.xlu0 %v280, 8
        %v744 = vpop.permute.xlu0 %743
        %745 = vrot.lane.b32.xlu0 %v281, 8
        %v746 = vpop.permute.xlu0 %745
        %747 = vrot.lane.b32.xlu0 %v282, 8
        %v748 = vpop.permute.xlu0 %747
        %749 = vrot.lane.b32.xlu0 %v283, 8
        %v750 = vpop.permute.xlu0 %749
        %751 = vrot.lane.b32.xlu0 %v284, 8
        %v752 = vpop.permute.xlu0 %751
        %753 = vrot.lane.b32.xlu0 %v285, 8
        %v754 = vpop.permute.xlu0 %753
        %755 = vrot.lane.b32.xlu0 %v286, 8
        %v756 = vpop.permute.xlu0 %755
        %757 = vrot.lane.b32.xlu0 %v287, 8
        %v758 = vpop.permute.xlu0 %757
        %759 = vrot.lane.b32.xlu0 %v288, 8
        %v760 = vpop.permute.xlu0 %759
        %761 = vrot.lane.b32.xlu0 %v289, 8
        %v762 = vpop.permute.xlu0 %761
        %763 = vrot.lane.b32.xlu0 %v290, 8
        %v764 = vpop.permute.xlu0 %763
        %765 = vrot.lane.b32.xlu0 %v291, 8
        %v766 = vpop.permute.xlu0 %765
        %767 = vrot.lane.b32.xlu0 %v292, 8
        %v768 = vpop.permute.xlu0 %767
        %769 = vrot.lane.b32.xlu0 %v293, 8
        %v770 = vpop.permute.xlu0 %769
        %771 = vrot.lane.b32.xlu0 %v294, 8
        %v772 = vpop.permute.xlu0 %771
        %773 = vrot.lane.b32.xlu0 %v295, 8
        %v774 = vpop.permute.xlu0 %773
        %775 = vrot.lane.b32.xlu0 %v296, 8
        %v776 = vpop.permute.xlu0 %775
        %849 = vrot.lane.b32.xlu0 %v299, 12
        %v850 = vpop.permute.xlu0 %849
        %851 = vrot.lane.b32.xlu0 %v300, 12
        %v852 = vpop.permute.xlu0 %851
        %853 = vrot.lane.b32.xlu0 %v301, 12
        %v854 = vpop.permute.xlu0 %853
        %855 = vrot.lane.b32.xlu0 %v302, 12
        %v856 = vpop.permute.xlu0 %855
        %857 = vrot.lane.b32.xlu0 %v303, 12
        %v858 = vpop.permute.xlu0 %857
        %859 = vrot.lane.b32.xlu0 %v304, 12
        %v860 = vpop.permute.xlu0 %859
        %861 = vrot.lane.b32.xlu0 %v305, 12
        %v862 = vpop.permute.xlu0 %861
        %863 = vrot.lane.b32.xlu0 %v306, 12
        %v864 = vpop.permute.xlu0 %863
        %865 = vrot.lane.b32.xlu0 %v307, 12
        %v866 = vpop.permute.xlu0 %865
        %867 = vrot.lane.b32.xlu0 %v308, 12
        %v868 = vpop.permute.xlu0 %867
        %869 = vrot.lane.b32.xlu0 %v309, 12
        %v870 = vpop.permute.xlu0 %869
        %871 = vrot.lane.b32.xlu0 %v310, 12
        %v872 = vpop.permute.xlu0 %871
        %873 = vrot.lane.b32.xlu0 %v311, 12
        %v874 = vpop.permute.xlu0 %873
        %875 = vrot.lane.b32.xlu0 %v312, 12
        %v876 = vpop.permute.xlu0 %875
        %877 = vrot.lane.b32.xlu0 %v313, 12
        %v878 = vpop.permute.xlu0 %877
        %879 = vrot.lane.b32.xlu0 %v314, 12
        %v880 = vpop.permute.xlu0 %879
        %881 = vrot.lane.b32.xlu0 %v315, 12
        %v882 = vpop.permute.xlu0 %881
        %883 = vrot.lane.b32.xlu0 %v316, 12
        %v884 = vpop.permute.xlu0 %883
        %885 = vrot.lane.b32.xlu0 %v317, 12
        %v886 = vpop.permute.xlu0 %885
        %887 = vrot.lane.b32.xlu0 %v318, 12
        %v888 = vpop.permute.xlu0 %887
        %889 = vrot.lane.b32.xlu0 %v319, 12
        %v890 = vpop.permute.xlu0 %889
        %891 = vrot.lane.b32.xlu0 %v320, 12
        %v892 = vpop.permute.xlu0 %891
        %893 = vrot.lane.b32.xlu0 %v321, 12
        %v894 = vpop.permute.xlu0 %893
        %895 = vrot.lane.b32.xlu0 %v322, 12
        %v896 = vpop.permute.xlu0 %895
        %897 = vrot.lane.b32.xlu0 %v323, 12
        %v898 = vpop.permute.xlu0 %897
        %899 = vrot.lane.b32.xlu0 %v324, 12
        %v900 = vpop.permute.xlu0 %899
        %901 = vrot.lane.b32.xlu0 %v325, 12
        %v902 = vpop.permute.xlu0 %901
        %903 = vrot.lane.b32.xlu0 %v326, 12
        %v904 = vpop.permute.xlu0 %903
        %905 = vrot.lane.b32.xlu0 %v327, 12
        %v906 = vpop.permute.xlu0 %905
        %907 = vrot.lane.b32.xlu0 %v328, 12
        %v908 = vpop.permute.xlu0 %907
        %909 = vrot.lane.b32.xlu0 %v329, 12
        %v910 = vpop.permute.xlu0 %909
        %911 = vrot.lane.b32.xlu0 %v330, 12
        %v912 = vpop.permute.xlu0 %911
        %913 = vrot.lane.b32.xlu0 %v331, 12
        %v914 = vpop.permute.xlu0 %913
        %915 = vrot.lane.b32.xlu0 %v332, 12
        %v916 = vpop.permute.xlu0 %915
        %917 = vrot.lane.b32.xlu0 %v333, 12
        %v918 = vpop.permute.xlu0 %917
        %919 = vrot.lane.b32.xlu0 %v334, 12
        %v920 = vpop.permute.xlu0 %919
        %993 = vrot.lane.b32.xlu0 %v337, 16
        %v994 = vpop.permute.xlu0 %993
        %995 = vrot.lane.b32.xlu0 %v338, 16
        %v996 = vpop.permute.xlu0 %995
        %997 = vrot.lane.b32.xlu0 %v339, 16
        %v998 = vpop.permute.xlu0 %997
        %999 = vrot.lane.b32.xlu0 %v340, 16
        %v1000 = vpop.permute.xlu0 %999
        %1001 = vrot.lane.b32.xlu0 %v341, 16
        %v1002 = vpop.permute.xlu0 %1001
        %1003 = vrot.lane.b32.xlu0 %v342, 16
        %v1004 = vpop.permute.xlu0 %1003
        %1005 = vrot.lane.b32.xlu0 %v343, 16
        %v1006 = vpop.permute.xlu0 %1005
        %1007 = vrot.lane.b32.xlu0 %v344, 16
        %v1008 = vpop.permute.xlu0 %1007
        %1009 = vrot.lane.b32.xlu0 %v345, 16
        %v1010 = vpop.permute.xlu0 %1009
        %1011 = vrot.lane.b32.xlu0 %v346, 16
        %v1012 = vpop.permute.xlu0 %1011
        %1013 = vrot.lane.b32.xlu0 %v347, 16
        %v1014 = vpop.permute.xlu0 %1013
        %1015 = vrot.lane.b32.xlu0 %v348, 16
        %v1016 = vpop.permute.xlu0 %1015
        %1017 = vrot.lane.b32.xlu0 %v349, 16
        %v1018 = vpop.permute.xlu0 %1017
        %1019 = vrot.lane.b32.xlu0 %v350, 16
        %v1020 = vpop.permute.xlu0 %1019
        %1021 = vrot.lane.b32.xlu0 %v351, 16
        %v1022 = vpop.permute.xlu0 %1021
        %1023 = vrot.lane.b32.xlu0 %v352, 16
        %v1024 = vpop.permute.xlu0 %1023
        %1025 = vrot.lane.b32.xlu0 %v353, 16
        %v1026 = vpop.permute.xlu0 %1025
        %1027 = vrot.lane.b32.xlu0 %v354, 16
        %v1028 = vpop.permute.xlu0 %1027
        %1029 = vrot.lane.b32.xlu0 %v355, 16
        %v1030 = vpop.permute.xlu0 %1029
        %1031 = vrot.lane.b32.xlu0 %v356, 16
        %v1032 = vpop.permute.xlu0 %1031
        %1033 = vrot.lane.b32.xlu0 %v357, 16
        %v1034 = vpop.permute.xlu0 %1033
        %1035 = vrot.lane.b32.xlu0 %v358, 16
        %v1036 = vpop.permute.xlu0 %1035
        %1037 = vrot.lane.b32.xlu0 %v359, 16
        %v1038 = vpop.permute.xlu0 %1037
        %1039 = vrot.lane.b32.xlu0 %v360, 16
        %v1040 = vpop.permute.xlu0 %1039
        %1041 = vrot.lane.b32.xlu0 %v361, 16
        %v1042 = vpop.permute.xlu0 %1041
        %1043 = vrot.lane.b32.xlu0 %v362, 16
        %v1044 = vpop.permute.xlu0 %1043
        %1045 = vrot.lane.b32.xlu0 %v363, 16
        %v1046 = vpop.permute.xlu0 %1045
        %1047 = vrot.lane.b32.xlu0 %v364, 16
        %v1048 = vpop.permute.xlu0 %1047
        %1049 = vrot.lane.b32.xlu0 %v365, 16
        %v1050 = vpop.permute.xlu0 %1049
        %1051 = vrot.lane.b32.xlu0 %v366, 16
        %v1052 = vpop.permute.xlu0 %1051
        %1053 = vrot.lane.b32.xlu0 %v367, 16
        %v1054 = vpop.permute.xlu0 %1053
        %1055 = vrot.lane.b32.xlu0 %v368, 16
        %v1056 = vpop.permute.xlu0 %1055
        %1057 = vrot.lane.b32.xlu0 %v369, 16
        %v1058 = vpop.permute.xlu0 %1057
        %1059 = vrot.lane.b32.xlu0 %v370, 16
        %v1060 = vpop.permute.xlu0 %1059
        %1061 = vrot.lane.b32.xlu0 %v371, 16
        %v1062 = vpop.permute.xlu0 %1061
        %1063 = vrot.lane.b32.xlu0 %v372, 16
        %v1064 = vpop.permute.xlu0 %1063
        %1137 = vrot.lane.b32.xlu0 %v375, 20
        %v1138 = vpop.permute.xlu0 %1137
        %1139 = vrot.lane.b32.xlu0 %v376, 20
        %v1140 = vpop.permute.xlu0 %1139
        %1141 = vrot.lane.b32.xlu0 %v377, 20
        %v1142 = vpop.permute.xlu0 %1141
        %1143 = vrot.lane.b32.xlu0 %v378, 20
        %v1144 = vpop.permute.xlu0 %1143
        %1145 = vrot.lane.b32.xlu0 %v379, 20
        %v1146 = vpop.permute.xlu0 %1145
        %1147 = vrot.lane.b32.xlu0 %v380, 20
        %v1148 = vpop.permute.xlu0 %1147
        %1149 = vrot.lane.b32.xlu0 %v381, 20
        %v1150 = vpop.permute.xlu0 %1149
        %1151 = vrot.lane.b32.xlu0 %v382, 20
        %v1152 = vpop.permute.xlu0 %1151
        %1153 = vrot.lane.b32.xlu0 %v383, 20
        %v1154 = vpop.permute.xlu0 %1153
        %1155 = vrot.lane.b32.xlu0 %v384, 20
        %v1156 = vpop.permute.xlu0 %1155
        %1157 = vrot.lane.b32.xlu0 %v385, 20
        %v1158 = vpop.permute.xlu0 %1157
        %1159 = vrot.lane.b32.xlu0 %v386, 20
        %v1160 = vpop.permute.xlu0 %1159
        %1161 = vrot.lane.b32.xlu0 %v387, 20
        %v1162 = vpop.permute.xlu0 %1161
        %1163 = vrot.lane.b32.xlu0 %v388, 20
        %v1164 = vpop.permute.xlu0 %1163
        %1165 = vrot.lane.b32.xlu0 %v389, 20
        %v1166 = vpop.permute.xlu0 %1165
        %1167 = vrot.lane.b32.xlu0 %v390, 20
        %v1168 = vpop.permute.xlu0 %1167
        %1169 = vrot.lane.b32.xlu0 %v391, 20
        %v1170 = vpop.permute.xlu0 %1169
        %1171 = vrot.lane.b32.xlu0 %v392, 20
        %v1172 = vpop.permute.xlu0 %1171
        %1173 = vrot.lane.b32.xlu0 %v393, 20
        %v1174 = vpop.permute.xlu0 %1173
        %1175 = vrot.lane.b32.xlu0 %v394, 20
        %v1176 = vpop.permute.xlu0 %1175
        %1177 = vrot.lane.b32.xlu0 %v395, 20
        %v1178 = vpop.permute.xlu0 %1177
        %1179 = vrot.lane.b32.xlu0 %v396, 20
        %v1180 = vpop.permute.xlu0 %1179
        %1181 = vrot.lane.b32.xlu0 %v397, 20
        %v1182 = vpop.permute.xlu0 %1181
        %1183 = vrot.lane.b32.xlu0 %v398, 20
        %v1184 = vpop.permute.xlu0 %1183
        %1185 = vrot.lane.b32.xlu0 %v399, 20
        %v1186 = vpop.permute.xlu0 %1185
        %1187 = vrot.lane.b32.xlu0 %v400, 20
        %v1188 = vpop.permute.xlu0 %1187
        %1189 = vrot.lane.b32.xlu0 %v401, 20
        %v1190 = vpop.permute.xlu0 %1189
        %1191 = vrot.lane.b32.xlu0 %v402, 20
        %v1192 = vpop.permute.xlu0 %1191
        %1193 = vrot.lane.b32.xlu0 %v403, 20
        %v1194 = vpop.permute.xlu0 %1193
        %1195 = vrot.lane.b32.xlu0 %v404, 20
        %v1196 = vpop.permute.xlu0 %1195
        %1197 = vrot.lane.b32.xlu0 %v405, 20
        %v1198 = vpop.permute.xlu0 %1197
        %1199 = vrot.lane.b32.xlu0 %v406, 20
        %v1200 = vpop.permute.xlu0 %1199
        %1201 = vrot.lane.b32.xlu0 %v407, 20
        %v1202 = vpop.permute.xlu0 %1201
        %1203 = vrot.lane.b32.xlu0 %v408, 20
        %v1204 = vpop.permute.xlu0 %1203
        %1205 = vrot.lane.b32.xlu0 %v409, 20
        %v1206 = vpop.permute.xlu0 %1205
        %1207 = vrot.lane.b32.xlu0 %v410, 20
        %v1208 = vpop.permute.xlu0 %1207
        %1281 = vrot.lane.b32.xlu0 %v413, 24
        %v1282 = vpop.permute.xlu0 %1281
        %1283 = vrot.lane.b32.xlu0 %v414, 24
        %v1284 = vpop.permute.xlu0 %1283
        %1285 = vrot.lane.b32.xlu0 %v415, 24
        %v1286 = vpop.permute.xlu0 %1285
        %1287 = vrot.lane.b32.xlu0 %v416, 24
        %v1288 = vpop.permute.xlu0 %1287
        %1289 = vrot.lane.b32.xlu0 %v417, 24
        %v1290 = vpop.permute.xlu0 %1289
        %1291 = vrot.lane.b32.xlu0 %v418, 24
        %v1292 = vpop.permute.xlu0 %1291
        %1293 = vrot.lane.b32.xlu0 %v419, 24
        %v1294 = vpop.permute.xlu0 %1293
        %1295 = vrot.lane.b32.xlu0 %v420, 24
        %v1296 = vpop.permute.xlu0 %1295
        %1297 = vrot.lane.b32.xlu0 %v421, 24
        %v1298 = vpop.permute.xlu0 %1297
        %1299 = vrot.lane.b32.xlu0 %v422, 24
        %v1300 = vpop.permute.xlu0 %1299
        %1301 = vrot.lane.b32.xlu0 %v423, 24
        %v1302 = vpop.permute.xlu0 %1301
        %1303 = vrot.lane.b32.xlu0 %v424, 24
        %v1304 = vpop.permute.xlu0 %1303
        %1305 = vrot.lane.b32.xlu0 %v425, 24
        %v1306 = vpop.permute.xlu0 %1305
        %1307 = vrot.lane.b32.xlu0 %v426, 24
        %v1308 = vpop.permute.xlu0 %1307
        %1309 = vrot.lane.b32.xlu0 %v427, 24
        %v1310 = vpop.permute.xlu0 %1309
        %1311 = vrot.lane.b32.xlu0 %v428, 24
        %v1312 = vpop.permute.xlu0 %1311
        %1313 = vrot.lane.b32.xlu0 %v429, 24
        %v1314 = vpop.permute.xlu0 %1313
        %1315 = vrot.lane.b32.xlu0 %v430, 24
        %v1316 = vpop.permute.xlu0 %1315
        %1317 = vrot.lane.b32.xlu0 %v431, 24
        %v1318 = vpop.permute.xlu0 %1317
        %1319 = vrot.lane.b32.xlu0 %v432, 24
        %v1320 = vpop.permute.xlu0 %1319
        %1321 = vrot.lane.b32.xlu0 %v433, 24
        %v1322 = vpop.permute.xlu0 %1321
        %1323 = vrot.lane.b32.xlu0 %v434, 24
        %v1324 = vpop.permute.xlu0 %1323
        %1325 = vrot.lane.b32.xlu0 %v435, 24
        %v1326 = vpop.permute.xlu0 %1325
        %1327 = vrot.lane.b32.xlu0 %v436, 24
        %v1328 = vpop.permute.xlu0 %1327
        %1329 = vrot.lane.b32.xlu0 %v437, 24
        %v1330 = vpop.permute.xlu0 %1329
        %1331 = vrot.lane.b32.xlu0 %v438, 24
        %v1332 = vpop.permute.xlu0 %1331
        %1333 = vrot.lane.b32.xlu0 %v439, 24
        %v1334 = vpop.permute.xlu0 %1333
        %1335 = vrot.lane.b32.xlu0 %v440, 24
        %v1336 = vpop.permute.xlu0 %1335
        %1337 = vrot.lane.b32.xlu0 %v441, 24
        %v1338 = vpop.permute.xlu0 %1337
        %1339 = vrot.lane.b32.xlu0 %v442, 24
        %v1340 = vpop.permute.xlu0 %1339
        %1341 = vrot.lane.b32.xlu0 %v443, 24
        %v1342 = vpop.permute.xlu0 %1341
        %1343 = vrot.lane.b32.xlu0 %v444, 24
        %v1344 = vpop.permute.xlu0 %1343
        %1345 = vrot.lane.b32.xlu0 %v445, 24
        %v1346 = vpop.permute.xlu0 %1345
        %1347 = vrot.lane.b32.xlu0 %v446, 24
        %v1348 = vpop.permute.xlu0 %1347
        %1349 = vrot.lane.b32.xlu0 %v447, 24
        %v1350 = vpop.permute.xlu0 %1349
        %1351 = vrot.lane.b32.xlu0 %v448, 24
        %v1352 = vpop.permute.xlu0 %1351
        %1425 = vrot.lane.b32.xlu0 %v451, 28
        %v1426 = vpop.permute.xlu0 %1425
        %1427 = vrot.lane.b32.xlu0 %v452, 28
        %v1428 = vpop.permute.xlu0 %1427
        %1429 = vrot.lane.b32.xlu0 %v453, 28
        %v1430 = vpop.permute.xlu0 %1429
        %1431 = vrot.lane.b32.xlu0 %v454, 28
        %v1432 = vpop.permute.xlu0 %1431
        %1433 = vrot.lane.b32.xlu0 %v455, 28
        %v1434 = vpop.permute.xlu0 %1433
        %1435 = vrot.lane.b32.xlu0 %v456, 28
        %v1436 = vpop.permute.xlu0 %1435
        %1437 = vrot.lane.b32.xlu0 %v457, 28
        %v1438 = vpop.permute.xlu0 %1437
        %1439 = vrot.lane.b32.xlu0 %v458, 28
        %v1440 = vpop.permute.xlu0 %1439
        %1441 = vrot.lane.b32.xlu0 %v459, 28
        %v1442 = vpop.permute.xlu0 %1441
        %1443 = vrot.lane.b32.xlu0 %v460, 28
        %v1444 = vpop.permute.xlu0 %1443
        %1445 = vrot.lane.b32.xlu0 %v461, 28
        %v1446 = vpop.permute.xlu0 %1445
        %1447 = vrot.lane.b32.xlu0 %v462, 28
        %v1448 = vpop.permute.xlu0 %1447
        %1449 = vrot.lane.b32.xlu0 %v463, 28
        %v1450 = vpop.permute.xlu0 %1449
        %1451 = vrot.lane.b32.xlu0 %v464, 28
        %v1452 = vpop.permute.xlu0 %1451
        %1453 = vrot.lane.b32.xlu0 %v465, 28
        %v1454 = vpop.permute.xlu0 %1453
        %1455 = vrot.lane.b32.xlu0 %v466, 28
        %v1456 = vpop.permute.xlu0 %1455
        %1457 = vrot.lane.b32.xlu0 %v467, 28
        %v1458 = vpop.permute.xlu0 %1457
        %1459 = vrot.lane.b32.xlu0 %v468, 28
        %v1460 = vpop.permute.xlu0 %1459
        %1461 = vrot.lane.b32.xlu0 %v469, 28
        %v1462 = vpop.permute.xlu0 %1461
        %1463 = vrot.lane.b32.xlu0 %v470, 28
        %v1464 = vpop.permute.xlu0 %1463
        %1465 = vrot.lane.b32.xlu0 %v471, 28
        %v1466 = vpop.permute.xlu0 %1465
        %1467 = vrot.lane.b32.xlu0 %v472, 28
        %v1468 = vpop.permute.xlu0 %1467
        %1469 = vrot.lane.b32.xlu0 %v473, 28
        %v1470 = vpop.permute.xlu0 %1469
        %1471 = vrot.lane.b32.xlu0 %v474, 28
        %v1472 = vpop.permute.xlu0 %1471
        %1473 = vrot.lane.b32.xlu0 %v475, 28
        %v1474 = vpop.permute.xlu0 %1473
        %1475 = vrot.lane.b32.xlu0 %v476, 28
        %v1476 = vpop.permute.xlu0 %1475
        %1477 = vrot.lane.b32.xlu0 %v477, 28
        %v1478 = vpop.permute.xlu0 %1477
        %1479 = vrot.lane.b32.xlu0 %v478, 28
        %v1480 = vpop.permute.xlu0 %1479
        %1481 = vrot.lane.b32.xlu0 %v479, 28
        %v1482 = vpop.permute.xlu0 %1481
        %1483 = vrot.lane.b32.xlu0 %v480, 28
        %v1484 = vpop.permute.xlu0 %1483
        %1485 = vrot.lane.b32.xlu0 %v481, 28
        %v1486 = vpop.permute.xlu0 %1485
        %1487 = vrot.lane.b32.xlu0 %v482, 28
        %v1488 = vpop.permute.xlu0 %1487
        %1489 = vrot.lane.b32.xlu0 %v483, 28
        %v1490 = vpop.permute.xlu0 %1489
        %1491 = vrot.lane.b32.xlu0 %v484, 28
        %v1492 = vpop.permute.xlu0 %1491
        %1493 = vrot.lane.b32.xlu0 %v485, 28
        %v1494 = vpop.permute.xlu0 %1493
        %1495 = vrot.lane.b32.xlu0 %v486, 28
        %v1496 = vpop.permute.xlu0 %1495
        %1569 = vrot.lane.b32.xlu0 %v489, 32
        %v1570 = vpop.permute.xlu0 %1569
        %1571 = vrot.lane.b32.xlu0 %v490, 32
        %v1572 = vpop.permute.xlu0 %1571
        %1573 = vrot.lane.b32.xlu0 %v491, 32
        %v1574 = vpop.permute.xlu0 %1573
        %1575 = vrot.lane.b32.xlu0 %v492, 32
        %v1576 = vpop.permute.xlu0 %1575
        %1577 = vrot.lane.b32.xlu0 %v493, 32
        %v1578 = vpop.permute.xlu0 %1577
        %1579 = vrot.lane.b32.xlu0 %v494, 32
        %v1580 = vpop.permute.xlu0 %1579
        %1581 = vrot.lane.b32.xlu0 %v495, 32
        %v1582 = vpop.permute.xlu0 %1581
        %1583 = vrot.lane.b32.xlu0 %v496, 32
        %v1584 = vpop.permute.xlu0 %1583
        %1585 = vrot.lane.b32.xlu0 %v497, 32
        %v1586 = vpop.permute.xlu0 %1585
        %1587 = vrot.lane.b32.xlu0 %v498, 32
        %v1588 = vpop.permute.xlu0 %1587
        %1589 = vrot.lane.b32.xlu0 %v499, 32
        %v1590 = vpop.permute.xlu0 %1589
        %1591 = vrot.lane.b32.xlu0 %v500, 32
        %v1592 = vpop.permute.xlu0 %1591
        %1593 = vrot.lane.b32.xlu0 %v501, 32
        %v1594 = vpop.permute.xlu0 %1593
        %1595 = vrot.lane.b32.xlu0 %v502, 32
        %v1596 = vpop.permute.xlu0 %1595
        %1597 = vrot.lane.b32.xlu0 %v503, 32
        %v1598 = vpop.permute.xlu0 %1597
        %1599 = vrot.lane.b32.xlu0 %v504, 32
        %v1600 = vpop.permute.xlu0 %1599
        %1601 = vrot.lane.b32.xlu0 %v505, 32
        %v1602 = vpop.permute.xlu0 %1601
        %1603 = vrot.lane.b32.xlu0 %v506, 32
        %v1604 = vpop.permute.xlu0 %1603
        %1605 = vrot.lane.b32.xlu0 %v507, 32
        %v1606 = vpop.permute.xlu0 %1605
        %1607 = vrot.lane.b32.xlu0 %v508, 32
        %v1608 = vpop.permute.xlu0 %1607
        %1609 = vrot.lane.b32.xlu0 %v509, 32
        %v1610 = vpop.permute.xlu0 %1609
        %1611 = vrot.lane.b32.xlu0 %v510, 32
        %v1612 = vpop.permute.xlu0 %1611
        %1613 = vrot.lane.b32.xlu0 %v511, 32
        %v1614 = vpop.permute.xlu0 %1613
        %1615 = vrot.lane.b32.xlu0 %v512, 32
        %v1616 = vpop.permute.xlu0 %1615
        %1617 = vrot.lane.b32.xlu0 %v513, 32
        %v1618 = vpop.permute.xlu0 %1617
        %1619 = vrot.lane.b32.xlu0 %v514, 32
        %v1620 = vpop.permute.xlu0 %1619
        %1621 = vrot.lane.b32.xlu0 %v515, 32
        %v1622 = vpop.permute.xlu0 %1621
        %1623 = vrot.lane.b32.xlu0 %v516, 32
        %v1624 = vpop.permute.xlu0 %1623
        %1625 = vrot.lane.b32.xlu0 %v517, 32
        %v1626 = vpop.permute.xlu0 %1625
        %1627 = vrot.lane.b32.xlu0 %v518, 32
        %v1628 = vpop.permute.xlu0 %1627
        %1629 = vrot.lane.b32.xlu0 %v519, 32
        %v1630 = vpop.permute.xlu0 %1629
        %1631 = vrot.lane.b32.xlu0 %v520, 32
        %v1632 = vpop.permute.xlu0 %1631
        %1633 = vrot.lane.b32.xlu0 %v521, 32
        %v1634 = vpop.permute.xlu0 %1633
        %1635 = vrot.lane.b32.xlu0 %v522, 32
        %v1636 = vpop.permute.xlu0 %1635
        %1637 = vrot.lane.b32.xlu0 %v523, 32
        %v1638 = vpop.permute.xlu0 %1637
        %1639 = vrot.lane.b32.xlu0 %v524, 32
        %v1640 = vpop.permute.xlu0 %1639
        %vm1677 = vcmask 31744
        %v1678 = vsel %vm1677, %v185, %v562
        %v1679 = vsel %vm1677, %v186, %v564
        %v1680 = vsel %vm1677, %v187, %v566
        %v1681 = vsel %vm1677, %v188, %v568
        %v1682 = vsel %vm1677, %v189, %v570
        %v1683 = vsel %vm1677, %v190, %v572
        %v1684 = vsel %vm1677, %v191, %v574
        %v1685 = vsel %vm1677, %v192, %v576
        %v1686 = vsel %vm1677, %v193, %v578
        %v1687 = vsel %vm1677, %v194, %v580
        %v1688 = vsel %vm1677, %v195, %v582
        %v1689 = vsel %vm1677, %v196, %v584
        %v1690 = vsel %vm1677, %v197, %v586
        %v1691 = vsel %vm1677, %v198, %v588
        %v1692 = vsel %vm1677, %v199, %v590
        %v1693 = vsel %vm1677, %v200, %v592
        %v1694 = vsel %vm1677, %v201, %v594
        %v1695 = vsel %vm1677, %v202, %v596
        %v1696 = vsel %vm1677, %v203, %v598
        %v1697 = vsel %vm1677, %v204, %v600
        %v1698 = vsel %vm1677, %v205, %v602
        %v1699 = vsel %vm1677, %v206, %v604
        %v1700 = vsel %vm1677, %v207, %v606
        %v1701 = vsel %vm1677, %v208, %v608
        %v1702 = vsel %vm1677, %v209, %v610
        %v1703 = vsel %vm1677, %v210, %v612
        %v1704 = vsel %vm1677, %v211, %v614
        %v1705 = vsel %vm1677, %v212, %v616
        %v1706 = vsel %vm1677, %v213, %v618
        %v1707 = vsel %vm1677, %v214, %v620
        %v1708 = vsel %vm1677, %v215, %v622
        %v1709 = vsel %vm1677, %v216, %v624
        %v1710 = vsel %vm1677, %v217, %v626
        %v1711 = vsel %vm1677, %v218, %v628
        %v1712 = vsel %vm1677, %v219, %v630
        %v1713 = vsel %vm1677, %v220, %v632
        %vm1714 = vcmask 64512
        %v1715 = vsel %vm1714, %v1678, %v706
        %v1716 = vsel %vm1714, %v1679, %v708
        %v1717 = vsel %vm1714, %v1680, %v710
        %v1718 = vsel %vm1714, %v1681, %v712
        %v1719 = vsel %vm1714, %v1682, %v714
        %v1720 = vsel %vm1714, %v1683, %v716
        %v1721 = vsel %vm1714, %v1684, %v718
        %v1722 = vsel %vm1714, %v1685, %v720
        %v1723 = vsel %vm1714, %v1686, %v722
        %v1724 = vsel %vm1714, %v1687, %v724
        %v1725 = vsel %vm1714, %v1688, %v726
        %v1726 = vsel %vm1714, %v1689, %v728
        %v1727 = vsel %vm1714, %v1690, %v730
        %v1728 = vsel %vm1714, %v1691, %v732
        %v1729 = vsel %vm1714, %v1692, %v734
        %v1730 = vsel %vm1714, %v1693, %v736
        %v1731 = vsel %vm1714, %v1694, %v738
        %v1732 = vsel %vm1714, %v1695, %v740
        %v1733 = vsel %vm1714, %v1696, %v742
        %v1734 = vsel %vm1714, %v1697, %v744
        %v1735 = vsel %vm1714, %v1698, %v746
        %v1736 = vsel %vm1714, %v1699, %v748
        %v1737 = vsel %vm1714, %v1700, %v750
        %v1738 = vsel %vm1714, %v1701, %v752
        %v1739 = vsel %vm1714, %v1702, %v754
        %v1740 = vsel %vm1714, %v1703, %v756
        %v1741 = vsel %vm1714, %v1704, %v758
        %v1742 = vsel %vm1714, %v1705, %v760
        %v1743 = vsel %vm1714, %v1706, %v762
        %v1744 = vsel %vm1714, %v1707, %v764
        %v1745 = vsel %vm1714, %v1708, %v766
        %v1746 = vsel %vm1714, %v1709, %v768
        %v1747 = vsel %vm1714, %v1710, %v770
        %v1748 = vsel %vm1714, %v1711, %v772
        %v1749 = vsel %vm1714, %v1712, %v774
        %v1750 = vsel %vm1714, %v1713, %v776
        %vm1751 = vcmask 97280
        %v1752 = vsel %vm1751, %v1715, %v850
        %v1753 = vsel %vm1751, %v1716, %v852
        %v1754 = vsel %vm1751, %v1717, %v854
        %v1755 = vsel %vm1751, %v1718, %v856
        %v1756 = vsel %vm1751, %v1719, %v858
        %v1757 = vsel %vm1751, %v1720, %v860
        %v1758 = vsel %vm1751, %v1721, %v862
        %v1759 = vsel %vm1751, %v1722, %v864
        %v1760 = vsel %vm1751, %v1723, %v866
        %v1761 = vsel %vm1751, %v1724, %v868
        %v1762 = vsel %vm1751, %v1725, %v870
        %v1763 = vsel %vm1751, %v1726, %v872
        %v1764 = vsel %vm1751, %v1727, %v874
        %v1765 = vsel %vm1751, %v1728, %v876
        %v1766 = vsel %vm1751, %v1729, %v878
        %v1767 = vsel %vm1751, %v1730, %v880
        %v1768 = vsel %vm1751, %v1731, %v882
        %v1769 = vsel %vm1751, %v1732, %v884
        %v1770 = vsel %vm1751, %v1733, %v886
        %v1771 = vsel %vm1751, %v1734, %v888
        %v1772 = vsel %vm1751, %v1735, %v890
        %v1773 = vsel %vm1751, %v1736, %v892
        %v1774 = vsel %vm1751, %v1737, %v894
        %v1775 = vsel %vm1751, %v1738, %v896
        %v1776 = vsel %vm1751, %v1739, %v898
        %v1777 = vsel %vm1751, %v1740, %v900
        %v1778 = vsel %vm1751, %v1741, %v902
        %v1779 = vsel %vm1751, %v1742, %v904
        %v1780 = vsel %vm1751, %v1743, %v906
        %v1781 = vsel %vm1751, %v1744, %v908
        %v1782 = vsel %vm1751, %v1745, %v910
        %v1783 = vsel %vm1751, %v1746, %v912
        %v1784 = vsel %vm1751, %v1747, %v914
        %v1785 = vsel %vm1751, %v1748, %v916
        %v1786 = vsel %vm1751, %v1749, %v918
        %v1787 = vsel %vm1751, %v1750, %v920
        %vm1788 = vcmask 130048
        %v1789 = vsel %vm1788, %v1752, %v994
        %v1790 = vsel %vm1788, %v1753, %v996
        %v1791 = vsel %vm1788, %v1754, %v998
        %v1792 = vsel %vm1788, %v1755, %v1000
        %v1793 = vsel %vm1788, %v1756, %v1002
        %v1794 = vsel %vm1788, %v1757, %v1004
        %v1795 = vsel %vm1788, %v1758, %v1006
        %v1796 = vsel %vm1788, %v1759, %v1008
        %v1797 = vsel %vm1788, %v1760, %v1010
        %v1798 = vsel %vm1788, %v1761, %v1012
        %v1799 = vsel %vm1788, %v1762, %v1014
        %v1800 = vsel %vm1788, %v1763, %v1016
        %v1801 = vsel %vm1788, %v1764, %v1018
        %v1802 = vsel %vm1788, %v1765, %v1020
        %v1803 = vsel %vm1788, %v1766, %v1022
        %v1804 = vsel %vm1788, %v1767, %v1024
        %v1805 = vsel %vm1788, %v1768, %v1026
        %v1806 = vsel %vm1788, %v1769, %v1028
        %v1807 = vsel %vm1788, %v1770, %v1030
        %v1808 = vsel %vm1788, %v1771, %v1032
        %v1809 = vsel %vm1788, %v1772, %v1034
        %v1810 = vsel %vm1788, %v1773, %v1036
        %v1811 = vsel %vm1788, %v1774, %v1038
        %v1812 = vsel %vm1788, %v1775, %v1040
        %v1813 = vsel %vm1788, %v1776, %v1042
        %v1814 = vsel %vm1788, %v1777, %v1044
        %v1815 = vsel %vm1788, %v1778, %v1046
        %v1816 = vsel %vm1788, %v1779, %v1048
        %v1817 = vsel %vm1788, %v1780, %v1050
        %v1818 = vsel %vm1788, %v1781, %v1052
        %v1819 = vsel %vm1788, %v1782, %v1054
        %v1820 = vsel %vm1788, %v1783, %v1056
        %v1821 = vsel %vm1788, %v1784, %v1058
        %v1822 = vsel %vm1788, %v1785, %v1060
        %v1823 = vsel %vm1788, %v1786, %v1062
        %v1824 = vsel %vm1788, %v1787, %v1064
        %vm1825 = vcmask 162816
        %v1826 = vsel %vm1825, %v1789, %v1138
        %v1827 = vsel %vm1825, %v1790, %v1140
        %v1828 = vsel %vm1825, %v1791, %v1142
        %v1829 = vsel %vm1825, %v1792, %v1144
        %v1830 = vsel %vm1825, %v1793, %v1146
        %v1831 = vsel %vm1825, %v1794, %v1148
        %v1832 = vsel %vm1825, %v1795, %v1150
        %v1833 = vsel %vm1825, %v1796, %v1152
        %v1834 = vsel %vm1825, %v1797, %v1154
        %v1835 = vsel %vm1825, %v1798, %v1156
        %v1836 = vsel %vm1825, %v1799, %v1158
        %v1837 = vsel %vm1825, %v1800, %v1160
        %v1838 = vsel %vm1825, %v1801, %v1162
        %v1839 = vsel %vm1825, %v1802, %v1164
        %v1840 = vsel %vm1825, %v1803, %v1166
        %v1841 = vsel %vm1825, %v1804, %v1168
        %v1842 = vsel %vm1825, %v1805, %v1170
        %v1843 = vsel %vm1825, %v1806, %v1172
        %v1844 = vsel %vm1825, %v1807, %v1174
        %v1845 = vsel %vm1825, %v1808, %v1176
        %v1846 = vsel %vm1825, %v1809, %v1178
        %v1847 = vsel %vm1825, %v1810, %v1180
        %v1848 = vsel %vm1825, %v1811, %v1182
        %v1849 = vsel %vm1825, %v1812, %v1184
        %v1850 = vsel %vm1825, %v1813, %v1186
        %v1851 = vsel %vm1825, %v1814, %v1188
        %v1852 = vsel %vm1825, %v1815, %v1190
        %v1853 = vsel %vm1825, %v1816, %v1192
        %v1854 = vsel %vm1825, %v1817, %v1194
        %v1855 = vsel %vm1825, %v1818, %v1196
        %v1856 = vsel %vm1825, %v1819, %v1198
        %v1857 = vsel %vm1825, %v1820, %v1200
        %v1858 = vsel %vm1825, %v1821, %v1202
        %v1859 = vsel %vm1825, %v1822, %v1204
        %v1860 = vsel %vm1825, %v1823, %v1206
        %v1861 = vsel %vm1825, %v1824, %v1208
        %vm1862 = vcmask 195584
        %v1863 = vsel %vm1862, %v1826, %v1282
        %v1864 = vsel %vm1862, %v1827, %v1284
        %v1865 = vsel %vm1862, %v1828, %v1286
        %v1866 = vsel %vm1862, %v1829, %v1288
        %v1867 = vsel %vm1862, %v1830, %v1290
        %v1868 = vsel %vm1862, %v1831, %v1292
        %v1869 = vsel %vm1862, %v1832, %v1294
        %v1870 = vsel %vm1862, %v1833, %v1296
        %v1871 = vsel %vm1862, %v1834, %v1298
        %v1872 = vsel %vm1862, %v1835, %v1300
        %v1873 = vsel %vm1862, %v1836, %v1302
        %v1874 = vsel %vm1862, %v1837, %v1304
        %v1875 = vsel %vm1862, %v1838, %v1306
        %v1876 = vsel %vm1862, %v1839, %v1308
        %v1877 = vsel %vm1862, %v1840, %v1310
        %v1878 = vsel %vm1862, %v1841, %v1312
        %v1879 = vsel %vm1862, %v1842, %v1314
        %v1880 = vsel %vm1862, %v1843, %v1316
        %v1881 = vsel %vm1862, %v1844, %v1318
        %v1882 = vsel %vm1862, %v1845, %v1320
        %v1883 = vsel %vm1862, %v1846, %v1322
        %v1884 = vsel %vm1862, %v1847, %v1324
        %v1885 = vsel %vm1862, %v1848, %v1326
        %v1886 = vsel %vm1862, %v1849, %v1328
        %v1887 = vsel %vm1862, %v1850, %v1330
        %v1888 = vsel %vm1862, %v1851, %v1332
        %v1889 = vsel %vm1862, %v1852, %v1334
        %v1890 = vsel %vm1862, %v1853, %v1336
        %v1891 = vsel %vm1862, %v1854, %v1338
        %v1892 = vsel %vm1862, %v1855, %v1340
        %v1893 = vsel %vm1862, %v1856, %v1342
        %v1894 = vsel %vm1862, %v1857, %v1344
        %v1895 = vsel %vm1862, %v1858, %v1346
        %v1896 = vsel %vm1862, %v1859, %v1348
        %v1897 = vsel %vm1862, %v1860, %v1350
        %v1898 = vsel %vm1862, %v1861, %v1352
        %vm1899 = vcmask 228352
        %v1900 = vsel %vm1899, %v1863, %v1426
        %v1901 = vsel %vm1899, %v1864, %v1428
        %v1902 = vsel %vm1899, %v1865, %v1430
        %v1903 = vsel %vm1899, %v1866, %v1432
        %v1904 = vsel %vm1899, %v1867, %v1434
        %v1905 = vsel %vm1899, %v1868, %v1436
        %v1906 = vsel %vm1899, %v1869, %v1438
        %v1907 = vsel %vm1899, %v1870, %v1440
        %v1908 = vsel %vm1899, %v1871, %v1442
        %v1909 = vsel %vm1899, %v1872, %v1444
        %v1910 = vsel %vm1899, %v1873, %v1446
        %v1911 = vsel %vm1899, %v1874, %v1448
        %v1912 = vsel %vm1899, %v1875, %v1450
        %v1913 = vsel %vm1899, %v1876, %v1452
        %v1914 = vsel %vm1899, %v1877, %v1454
        %v1915 = vsel %vm1899, %v1878, %v1456
        %v1916 = vsel %vm1899, %v1879, %v1458
        %v1917 = vsel %vm1899, %v1880, %v1460
        %v1918 = vsel %vm1899, %v1881, %v1462
        %v1919 = vsel %vm1899, %v1882, %v1464
        %v1920 = vsel %vm1899, %v1883, %v1466
        %v1921 = vsel %vm1899, %v1884, %v1468
        %v1922 = vsel %vm1899, %v1885, %v1470
        %v1923 = vsel %vm1899, %v1886, %v1472
        %v1924 = vsel %vm1899, %v1887, %v1474
        %v1925 = vsel %vm1899, %v1888, %v1476
        %v1926 = vsel %vm1899, %v1889, %v1478
        %v1927 = vsel %vm1899, %v1890, %v1480
        %v1928 = vsel %vm1899, %v1891, %v1482
        %v1929 = vsel %vm1899, %v1892, %v1484
        %v1930 = vsel %vm1899, %v1893, %v1486
        %v1931 = vsel %vm1899, %v1894, %v1488
        %v1932 = vsel %vm1899, %v1895, %v1490
        %v1933 = vsel %vm1899, %v1896, %v1492
        %v1934 = vsel %vm1899, %v1897, %v1494
        %v1935 = vsel %vm1899, %v1898, %v1496
        %vm1936 = vcmask 261120
        %v1937 = vsel %vm1936, %v1900, %v1570
        %v1938 = vsel %vm1936, %v1901, %v1572
        %v1939 = vsel %vm1936, %v1902, %v1574
        %v1940 = vsel %vm1936, %v1903, %v1576
        %v1941 = vsel %vm1936, %v1904, %v1578
        %v1942 = vsel %vm1936, %v1905, %v1580
        %v1943 = vsel %vm1936, %v1906, %v1582
        %v1944 = vsel %vm1936, %v1907, %v1584
        %v1945 = vsel %vm1936, %v1908, %v1586
        %v1946 = vsel %vm1936, %v1909, %v1588
        %v1947 = vsel %vm1936, %v1910, %v1590
        %v1948 = vsel %vm1936, %v1911, %v1592
        %v1949 = vsel %vm1936, %v1912, %v1594
        %v1950 = vsel %vm1936, %v1913, %v1596
        %v1951 = vsel %vm1936, %v1914, %v1598
        %v1952 = vsel %vm1936, %v1915, %v1600
        %v1953 = vsel %vm1936, %v1916, %v1602
        %v1954 = vsel %vm1936, %v1917, %v1604
        %v1955 = vsel %vm1936, %v1918, %v1606
        %v1956 = vsel %vm1936, %v1919, %v1608
        %v1957 = vsel %vm1936, %v1920, %v1610
        %v1958 = vsel %vm1936, %v1921, %v1612
        %v1959 = vsel %vm1936, %v1922, %v1614
        %v1960 = vsel %vm1936, %v1923, %v1616
        %v1961 = vsel %vm1936, %v1924, %v1618
        %v1962 = vsel %vm1936, %v1925, %v1620
        %v1963 = vsel %vm1936, %v1926, %v1622
        %v1964 = vsel %vm1936, %v1927, %v1624
        %v1965 = vsel %vm1936, %v1928, %v1626
        %v1966 = vsel %vm1936, %v1929, %v1628
        %v1967 = vsel %vm1936, %v1930, %v1630
        %v1968 = vsel %vm1936, %v1931, %v1632
        %v1969 = vsel %vm1936, %v1932, %v1634
        %v1970 = vsel %vm1936, %v1933, %v1636
        %v1971 = vsel %vm1936, %v1934, %v1638
        %v1972 = vsel %vm1936, %v1935, %v1640
        %v1973 = vld [vmem:[%s1] sm:$0xff]
        %v1974 = vld [vmem:[%s1 + $0x8] sm:$0xff]
        %v1975 = vld [vmem:[%s1 + $0x10] sm:$0xff]
        %v1976 = vld [vmem:[%s1 + $0x18] sm:$0xff]
        %v1977 = vld [vmem:[%s1 + $0x20] sm:$0xf]
        %v1978 = vld [vmem:[%s2] sm:$0x1]
        %v1980 = vlaneseq
        %v1981 = vshrl.u32 %v1980, 7
        %v1982 = vsub.s32 0, %v1981
        %v1983 = vrot.slane %v1978, %v1982
        %vm1985 = vcmask 293888
        %v1987 = vsel %vm1985, %v1937, 0
        %v1990 = vsel %vm1985, %v1938, 0
        %v1993 = vsel %vm1985, %v1939, 0
        %v1996 = vsel %vm1985, %v1940, 0
        %v1999 = vsel %vm1985, %v1941, 0
        %v2002 = vsel %vm1985, %v1942, 0
        %v2005 = vsel %vm1985, %v1943, 0
        %v2008 = vsel %vm1985, %v1944, 0
        %v2011 = vsel %vm1985, %v1945, 0
        %v2014 = vsel %vm1985, %v1946, 0
        %v2017 = vsel %vm1985, %v1947, 0
        %v2020 = vsel %vm1985, %v1948, 0
        %v2023 = vsel %vm1985, %v1949, 0
        %v2026 = vsel %vm1985, %v1950, 0
        %v2029 = vsel %vm1985, %v1951, 0
        %v2032 = vsel %vm1985, %v1952, 0
        %v2035 = vsel %vm1985, %v1953, 0
        %v2038 = vsel %vm1985, %v1954, 0
        %v2041 = vsel %vm1985, %v1955, 0
        %v2044 = vsel %vm1985, %v1956, 0
        %v2047 = vsel %vm1985, %v1957, 0
        %v2050 = vsel %vm1985, %v1958, 0
        %v2053 = vsel %vm1985, %v1959, 0
        %v2056 = vsel %vm1985, %v1960, 0
        %v2059 = vsel %vm1985, %v1961, 0
        %v2062 = vsel %vm1985, %v1962, 0
        %v2065 = vsel %vm1985, %v1963, 0
        %v2068 = vsel %vm1985, %v1964, 0
        %v2071 = vsel %vm1985, %v1965, 0
        %v2074 = vsel %vm1985, %v1966, 0
        %v2077 = vsel %vm1985, %v1967, 0
        %v2080 = vsel %vm1985, %v1968, 0
        %v2083 = vsel %vm1985, %v1969, 0
        %v2086 = vsel %vm1985, %v1970, 0
        %v2089 = vsel %vm1985, %v1971, 0
        %v2092 = vsel %vm1985, %v1972, 0
        %vm2094 = vcmask 1043456
        %v2096 = vsel %vm2094, %v1977, 0
        %2098 = vmatprep.subr.mxu0 0.0
        %2099 = vmatpush1.msra.mxu0 %v1973
        %2100 = vmatprep.subr.mxu0 0.0
        %2101 = vmatpush1.msra.mxu0 %v1974
        %2102 = vmatprep.subr.mxu0 0.0
        %2103 = vmatpush1.msra.mxu0 %v1975
        %2104 = vmatprep.subr.mxu0 0.0
        %2105 = vmatpush1.msra.mxu0 %v1976
        %2106 = vmatprep.subr.mxu0 0.0
        %2107 = vmatpush1.msra.mxu0 %v2096
        %2108 = vmatprep.subr.mxu0 0.0
        %2109 = vmatpush1.msra.mxu0 0.0
        %2110 = vmatprep.subr.mxu0 0.0
        %2111 = vmatpush1.msra.mxu0 0.0
        %2112 = vmatprep.subr.mxu0 0.0
        %2113 = vmatpush1.msra.mxu0 0.0
        %2114 = vmatprep.subr.mxu0 0.0
        %2115 = vmatpush1.msra.mxu0 0.0
        %2116 = vmatprep.subr.mxu0 0.0
        %2117 = vmatpush1.msra.mxu0 0.0
        %2118 = vmatprep.subr.mxu0 0.0
        %2119 = vmatpush1.msra.mxu0 0.0
        %2120 = vmatprep.subr.mxu0 0.0
        %2121 = vmatpush1.msra.mxu0 0.0
        %2122 = vmatprep.subr.mxu0 0.0
        %2123 = vmatpush1.msra.mxu0 0.0
        %2124 = vmatprep.subr.mxu0 0.0
        %2125 = vmatpush1.msra.mxu0 0.0
        %2126 = vmatprep.subr.mxu0 0.0
        %2127 = vmatpush1.msra.mxu0 0.0
        %2128 = vmatprep.subr.mxu0 0.0
        %2129 = vmatpush1.msra.mxu0 0.0
        %2130 = vmatprep.subr.mxu0 0.0
        %2131 = vmatpush1.msra.mxu0 0.0
        %2132 = vmatprep.subr.mxu0 0.0
        %2133 = vmatpush1.msra.mxu0 0.0
        %2134 = vmatprep.subr.mxu0 0.0
        %2135 = vmatpush1.msra.mxu0 0.0
        %2136 = vmatprep.subr.mxu0 0.0
        %2137 = vmatpush1.msra.mxu0 0.0
        %2138 = vmatprep.subr.mxu0 0.0
        %2139 = vmatpush1.msra.mxu0 0.0
        %2140 = vmatprep.subr.mxu0 0.0
        %2141 = vmatpush1.msra.mxu0 0.0
        %2142 = vmatprep.subr.mxu0 0.0
        %2143 = vmatpush1.msra.mxu0 0.0
        %2144 = vmatprep.subr.mxu0 0.0
        %2145 = vmatpush1.msra.mxu0 0.0
        %2146 = vmatprep.subr.mxu0 0.0
        %2147 = vmatpush1.msra.mxu0 0.0
        %2148 = vmatprep.subr.mxu0 0.0
        %2149 = vmatpush1.msra.mxu0 0.0
        %2150 = vmatprep.subr.mxu0 0.0
        %2151 = vmatpush1.msra.mxu0 0.0
        %2152 = vmatprep.subr.mxu0 0.0
        %2153 = vmatpush1.msra.mxu0 0.0
        %2154 = vmatprep.subr.mxu0 0.0
        %2155 = vmatpush1.msra.mxu0 0.0
        %2156 = vmatprep.subr.mxu0 0.0
        %2157 = vmatpush1.msra.mxu0 0.0
        %2158 = vmatprep.subr.mxu0 0.0
        %2159 = vmatpush1.msra.mxu0 0.0
        %2160 = vmatprep.subr.mxu0 0.0
        %2161 = vmatpush1.msra.mxu0 0.0
        %2162 = vmatprep.mubr.f32.mxu0 0.0
        %2163 = vmatmul.mubr.f32.gmra.mrb[0].mxu0 %v1987
        %v2164 = vpop.f32.mrb[0].mxu0
        %v2165 = vadd.f32 %v1983, %v2164
        %v2166 = vpop.f32.mrb[0].mxu0
        %2167 = vmatprep.mubr.f32.mxu0 0.0
        %2168 = vmatmul.mubr.f32.gmra.mrb[0].mxu0 %v1990
        %v2169 = vpop.f32.mrb[0].mxu0
        %v2170 = vadd.f32 %v1983, %v2169
        %v2171 = vpop.f32.mrb[0].mxu0
        %2172 = vmatprep.mubr.f32.mxu0 0.0
        %2173 = vmatmul.mubr.f32.gmra.mrb[0].mxu0 %v1993
        %v2174 = vpop.f32.mrb[0].mxu0
        %v2175 = vadd.f32 %v1983, %v2174
        %v2176 = vpop.f32.mrb[0].mxu0
        %2177 = vmatprep.mubr.f32.mxu0 0.0
        %2178 = vmatmul.mubr.f32.gmra.mrb[0].mxu0 %v1996
        %v2179 = vpop.f32.mrb[0].mxu0
        %v2180 = vadd.f32 %v1983, %v2179
        %v2181 = vpop.f32.mrb[0].mxu0
        %2182 = vmatprep.mubr.f32.mxu0 0.0
        %2183 = vmatmul.mubr.f32.gmra.mrb[0].mxu0 %v1999
        %v2184 = vpop.f32.mrb[0].mxu0
        %v2185 = vadd.f32 %v1983, %v2184
        %v2186 = vpop.f32.mrb[0].mxu0
        %2187 = vmatprep.mubr.f32.mxu0 0.0
        %2188 = vmatmul.mubr.f32.gmra.mrb[0].mxu0 %v2002
        %v2189 = vpop.f32.mrb[0].mxu0
        %v2190 = vadd.f32 %v1983, %v2189
        %v2191 = vpop.f32.mrb[0].mxu0
        %2192 = vmatprep.mubr.f32.mxu0 0.0
        %2193 = vmatmul.mubr.f32.gmra.mrb[0].mxu0 %v2005
        %v2194 = vpop.f32.mrb[0].mxu0
        %v2195 = vadd.f32 %v1983, %v2194
        %v2196 = vpop.f32.mrb[0].mxu0
        %2197 = vmatprep.mubr.f32.mxu0 0.0
        %2198 = vmatmul.mubr.f32.gmra.mrb[0].mxu0 %v2008
        %v2199 = vpop.f32.mrb[0].mxu0
        %v2200 = vadd.f32 %v1983, %v2199
        %v2201 = vpop.f32.mrb[0].mxu0
        %2202 = vmatprep.mubr.f32.mxu0 0.0
        %2203 = vmatmul.mubr.f32.gmra.mrb[0].mxu0 %v2011
        %v2204 = vpop.f32.mrb[0].mxu0
        %v2205 = vadd.f32 %v1983, %v2204
        %v2206 = vpop.f32.mrb[0].mxu0
        %2207 = vmatprep.mubr.f32.mxu0 0.0
        %2208 = vmatmul.mubr.f32.gmra.mrb[0].mxu0 %v2014
        %v2209 = vpop.f32.mrb[0].mxu0
        %v2210 = vadd.f32 %v1983, %v2209
        %v2211 = vpop.f32.mrb[0].mxu0
        %2212 = vmatprep.mubr.f32.mxu0 0.0
        %2213 = vmatmul.mubr.f32.gmra.mrb[0].mxu0 %v2017
        %v2214 = vpop.f32.mrb[0].mxu0
        %v2215 = vadd.f32 %v1983, %v2214
        %v2216 = vpop.f32.mrb[0].mxu0
        %2217 = vmatprep.mubr.f32.mxu0 0.0
        %2218 = vmatmul.mubr.f32.gmra.mrb[0].mxu0 %v2020
        %v2219 = vpop.f32.mrb[0].mxu0
        %v2220 = vadd.f32 %v1983, %v2219
        %v2221 = vpop.f32.mrb[0].mxu0
        %2222 = vmatprep.mubr.f32.mxu0 0.0
        %2223 = vmatmul.mubr.f32.gmra.mrb[0].mxu0 %v2023
        %v2224 = vpop.f32.mrb[0].mxu0
        %v2225 = vadd.f32 %v1983, %v2224
        %v2226 = vpop.f32.mrb[0].mxu0
        %2227 = vmatprep.mubr.f32.mxu0 0.0
        %2228 = vmatmul.mubr.f32.gmra.mrb[0].mxu0 %v2026
        %v2229 = vpop.f32.mrb[0].mxu0
        %v2230 = vadd.f32 %v1983, %v2229
        %v2231 = vpop.f32.mrb[0].mxu0
        %2232 = vmatprep.mubr.f32.mxu0 0.0
        %2233 = vmatmul.mubr.f32.gmra.mrb[0].mxu0 %v2029
        %v2234 = vpop.f32.mrb[0].mxu0
        %v2235 = vadd.f32 %v1983, %v2234
        %v2236 = vpop.f32.mrb[0].mxu0
        %2237 = vmatprep.mubr.f32.mxu0 0.0
        %2238 = vmatmul.mubr.f32.gmra.mrb[0].mxu0 %v2032
        %v2239 = vpop.f32.mrb[0].mxu0
        %v2240 = vadd.f32 %v1983, %v2239
        %v2241 = vpop.f32.mrb[0].mxu0
        %2242 = vmatprep.mubr.f32.mxu0 0.0
        %2243 = vmatmul.mubr.f32.gmra.mrb[0].mxu0 %v2035
        %v2244 = vpop.f32.mrb[0].mxu0
        %v2245 = vadd.f32 %v1983, %v2244
        %v2246 = vpop.f32.mrb[0].mxu0
        %2247 = vmatprep.mubr.f32.mxu0 0.0
        %2248 = vmatmul.mubr.f32.gmra.mrb[0].mxu0 %v2038
        %v2249 = vpop.f32.mrb[0].mxu0
        %v2250 = vadd.f32 %v1983, %v2249
        %v2251 = vpop.f32.mrb[0].mxu0
        %2252 = vmatprep.mubr.f32.mxu0 0.0
        %2253 = vmatmul.mubr.f32.gmra.mrb[0].mxu0 %v2041
        %v2254 = vpop.f32.mrb[0].mxu0
        %v2255 = vadd.f32 %v1983, %v2254
        %v2256 = vpop.f32.mrb[0].mxu0
        %2257 = vmatprep.mubr.f32.mxu0 0.0
        %2258 = vmatmul.mubr.f32.gmra.mrb[0].mxu0 %v2044
        %v2259 = vpop.f32.mrb[0].mxu0
        %v2260 = vadd.f32 %v1983, %v2259
        %v2261 = vpop.f32.mrb[0].mxu0
        %2262 = vmatprep.mubr.f32.mxu0 0.0
        %2263 = vmatmul.mubr.f32.gmra.mrb[0].mxu0 %v2047
        %v2264 = vpop.f32.mrb[0].mxu0
        %v2265 = vadd.f32 %v1983, %v2264
        %v2266 = vpop.f32.mrb[0].mxu0
        %2267 = vmatprep.mubr.f32.mxu0 0.0
        %2268 = vmatmul.mubr.f32.gmra.mrb[0].mxu0 %v2050
        %v2269 = vpop.f32.mrb[0].mxu0
        %v2270 = vadd.f32 %v1983, %v2269
        %v2271 = vpop.f32.mrb[0].mxu0
        %2272 = vmatprep.mubr.f32.mxu0 0.0
        %2273 = vmatmul.mubr.f32.gmra.mrb[0].mxu0 %v2053
        %v2274 = vpop.f32.mrb[0].mxu0
        %v2275 = vadd.f32 %v1983, %v2274
        %v2276 = vpop.f32.mrb[0].mxu0
        %2277 = vmatprep.mubr.f32.mxu0 0.0
        %2278 = vmatmul.mubr.f32.gmra.mrb[0].mxu0 %v2056
        %v2279 = vpop.f32.mrb[0].mxu0
        %v2280 = vadd.f32 %v1983, %v2279
        %v2281 = vpop.f32.mrb[0].mxu0
        %2282 = vmatprep.mubr.f32.mxu0 0.0
        %2283 = vmatmul.mubr.f32.gmra.mrb[0].mxu0 %v2059
        %v2284 = vpop.f32.mrb[0].mxu0
        %v2285 = vadd.f32 %v1983, %v2284
        %v2286 = vpop.f32.mrb[0].mxu0
        %2287 = vmatprep.mubr.f32.mxu0 0.0
        %2288 = vmatmul.mubr.f32.gmra.mrb[0].mxu0 %v2062
        %v2289 = vpop.f32.mrb[0].mxu0
        %v2290 = vadd.f32 %v1983, %v2289
        %v2291 = vpop.f32.mrb[0].mxu0
        %2292 = vmatprep.mubr.f32.mxu0 0.0
        %2293 = vmatmul.mubr.f32.gmra.mrb[0].mxu0 %v2065
        %v2294 = vpop.f32.mrb[0].mxu0
        %v2295 = vadd.f32 %v1983, %v2294
        %v2296 = vpop.f32.mrb[0].mxu0
        %2297 = vmatprep.mubr.f32.mxu0 0.0
        %2298 = vmatmul.mubr.f32.gmra.mrb[0].mxu0 %v2068
        %v2299 = vpop.f32.mrb[0].mxu0
        %v2300 = vadd.f32 %v1983, %v2299
        %v2301 = vpop.f32.mrb[0].mxu0
        %2302 = vmatprep.mubr.f32.mxu0 0.0
        %2303 = vmatmul.mubr.f32.gmra.mrb[0].mxu0 %v2071
        %v2304 = vpop.f32.mrb[0].mxu0
        %v2305 = vadd.f32 %v1983, %v2304
        %v2306 = vpop.f32.mrb[0].mxu0
        %2307 = vmatprep.mubr.f32.mxu0 0.0
        %2308 = vmatmul.mubr.f32.gmra.mrb[0].mxu0 %v2074
        %v2309 = vpop.f32.mrb[0].mxu0
        %v2310 = vadd.f32 %v1983, %v2309
        %v2311 = vpop.f32.mrb[0].mxu0
        %2312 = vmatprep.mubr.f32.mxu0 0.0
        %2313 = vmatmul.mubr.f32.gmra.mrb[0].mxu0 %v2077
        %v2314 = vpop.f32.mrb[0].mxu0
        %v2315 = vadd.f32 %v1983, %v2314
        %v2316 = vpop.f32.mrb[0].mxu0
        %2317 = vmatprep.mubr.f32.mxu0 0.0
        %2318 = vmatmul.mubr.f32.gmra.mrb[0].mxu0 %v2080
        %v2319 = vpop.f32.mrb[0].mxu0
        %v2320 = vadd.f32 %v1983, %v2319
        %v2321 = vpop.f32.mrb[0].mxu0
        %2322 = vmatprep.mubr.f32.mxu0 0.0
        %2323 = vmatmul.mubr.f32.gmra.mrb[0].mxu0 %v2083
        %v2324 = vpop.f32.mrb[0].mxu0
        %v2325 = vadd.f32 %v1983, %v2324
        %v2326 = vpop.f32.mrb[0].mxu0
        %2327 = vmatprep.mubr.f32.mxu0 0.0
        %2328 = vmatmul.mubr.f32.gmra.mrb[0].mxu0 %v2086
        %v2329 = vpop.f32.mrb[0].mxu0
        %v2330 = vadd.f32 %v1983, %v2329
        %v2331 = vpop.f32.mrb[0].mxu0
        %2332 = vmatprep.mubr.f32.mxu0 0.0
        %2333 = vmatmul.mubr.f32.gmra.mrb[0].mxu0 %v2089
        %v2334 = vpop.f32.mrb[0].mxu0
        %v2335 = vadd.f32 %v1983, %v2334
        %v2336 = vpop.f32.mrb[0].mxu0
        %2337 = vmatprep.mubr.f32.mxu0 0.0
        %2338 = vmatmul.mubr.f32.gmra.mrb[0].mxu0 %v2092
        %v2339 = vpop.f32.mrb[0].mxu0
        %v2340 = vadd.f32 %v1983, %v2339
        %v2341 = vpop.f32.mrb[0].mxu0
        %2342 = vdwg.mxu0
        %v2343 = vlaneseq
        %v2344 = vshrl.u32 %v2343, 7
        %v2345 = vadd.s32 %v2344, 8
        %v2346 = vadd.s32 %v2344, 16
        %v2347 = vadd.s32 %v2344, 24
        %v2348 = vadd.s32 %v2344, 32
        %v2349 = vadd.s32 %v2344, 40
        %v2350 = vadd.s32 %v2344, 48
        %v2351 = vadd.s32 %v2344, 56
        %v2352 = vadd.s32 %v2344, 64
        %v2353 = vadd.s32 %v2344, 72
        %v2354 = vadd.s32 %v2344, 80
        %v2355 = vadd.s32 %v2344, 88
        %v2356 = vadd.s32 %v2344, 96
        %v2357 = vadd.s32 %v2344, 104
        %v2358 = vadd.s32 %v2344, 112
        %v2359 = vadd.s32 %v2344, 120
        %v2360 = vadd.s32 %v2344, 128
        %v2361 = vadd.s32 %v2344, 136
        %v2362 = vadd.s32 %v2344, 144
        %v2363 = vadd.s32 %v2344, 152
        %v2364 = vadd.s32 %v2344, 160
        %v2365 = vadd.s32 %v2344, 168
        %v2366 = vadd.s32 %v2344, 176
        %v2367 = vadd.s32 %v2344, 184
        %v2368 = vadd.s32 %v2344, 192
        %v2369 = vadd.s32 %v2344, 200
        %v2370 = vadd.s32 %v2344, 208
        %v2371 = vadd.s32 %v2344, 216
        %v2372 = vadd.s32 %v2344, 224
        %v2373 = vadd.s32 %v2344, 232
        %v2374 = vadd.s32 %v2344, 240
        %v2375 = vadd.s32 %v2344, 248
        %v2376 = vadd.s32 %v2344, 256
        %v2377 = vadd.s32 %v2344, 264
        %v2378 = vadd.s32 %v2344, 272
        %v2379 = vadd.s32 %v2344, 280
        %v2380 = vstv %s183
        %v2381 = vadd.s32 %v2344, %v2380
        %v2382 = vadd.s32 %v2345, %v2380
        %v2383 = vadd.s32 %v2346, %v2380
        %v2384 = vadd.s32 %v2347, %v2380
        %v2385 = vadd.s32 %v2348, %v2380
        %v2386 = vadd.s32 %v2349, %v2380
        %v2387 = vadd.s32 %v2350, %v2380
        %v2388 = vadd.s32 %v2351, %v2380
        %v2389 = vadd.s32 %v2352, %v2380
        %v2390 = vadd.s32 %v2353, %v2380
        %v2391 = vadd.s32 %v2354, %v2380
        %v2392 = vadd.s32 %v2355, %v2380
        %v2393 = vadd.s32 %v2356, %v2380
        %v2394 = vadd.s32 %v2357, %v2380
        %v2395 = vadd.s32 %v2358, %v2380
        %v2396 = vadd.s32 %v2359, %v2380
        %v2397 = vadd.s32 %v2360, %v2380
        %v2398 = vadd.s32 %v2361, %v2380
        %v2399 = vadd.s32 %v2362, %v2380
        %v2400 = vadd.s32 %v2363, %v2380
        %v2401 = vadd.s32 %v2364, %v2380
        %v2402 = vadd.s32 %v2365, %v2380
        %v2403 = vadd.s32 %v2366, %v2380
        %v2404 = vadd.s32 %v2367, %v2380
        %v2405 = vadd.s32 %v2368, %v2380
        %v2406 = vadd.s32 %v2369, %v2380
        %v2407 = vadd.s32 %v2370, %v2380
        %v2408 = vadd.s32 %v2371, %v2380
        %v2409 = vadd.s32 %v2372, %v2380
        %v2410 = vadd.s32 %v2373, %v2380
        %v2411 = vadd.s32 %v2374, %v2380
        %v2412 = vadd.s32 %v2375, %v2380
        %v2413 = vadd.s32 %v2376, %v2380
        %v2414 = vadd.s32 %v2377, %v2380
        %v2415 = vadd.s32 %v2378, %v2380
        %v2416 = vadd.s32 %v2379, %v2380
        %vm2417 = vcmp.lt.s32.totalorder %v2381, 288
        %vm2418 = vcmp.lt.s32.totalorder %v2382, 288
        %vm2419 = vcmp.lt.s32.totalorder %v2383, 288
        %vm2420 = vcmp.lt.s32.totalorder %v2384, 288
        %vm2421 = vcmp.lt.s32.totalorder %v2385, 288
        %vm2422 = vcmp.lt.s32.totalorder %v2386, 288
        %vm2423 = vcmp.lt.s32.totalorder %v2387, 288
        %vm2424 = vcmp.lt.s32.totalorder %v2388, 288
        %vm2425 = vcmp.lt.s32.totalorder %v2389, 288
        %vm2426 = vcmp.lt.s32.totalorder %v2390, 288
        %vm2427 = vcmp.lt.s32.totalorder %v2391, 288
        %vm2428 = vcmp.lt.s32.totalorder %v2392, 288
        %vm2429 = vcmp.lt.s32.totalorder %v2393, 288
        %vm2430 = vcmp.lt.s32.totalorder %v2394, 288
        %vm2431 = vcmp.lt.s32.totalorder %v2395, 288
        %vm2432 = vcmp.lt.s32.totalorder %v2396, 288
        %vm2433 = vcmp.lt.s32.totalorder %v2397, 288
        %vm2434 = vcmp.lt.s32.totalorder %v2398, 288
        %vm2435 = vcmp.lt.s32.totalorder %v2399, 288
        %vm2436 = vcmp.lt.s32.totalorder %v2400, 288
        %vm2437 = vcmp.lt.s32.totalorder %v2401, 288
        %vm2438 = vcmp.lt.s32.totalorder %v2402, 288
        %vm2439 = vcmp.lt.s32.totalorder %v2403, 288
        %vm2440 = vcmp.lt.s32.totalorder %v2404, 288
        %vm2441 = vcmp.lt.s32.totalorder %v2405, 288
        %vm2442 = vcmp.lt.s32.totalorder %v2406, 288
        %vm2443 = vcmp.lt.s32.totalorder %v2407, 288
        %vm2444 = vcmp.lt.s32.totalorder %v2408, 288
        %vm2445 = vcmp.lt.s32.totalorder %v2409, 288
        %vm2446 = vcmp.lt.s32.totalorder %v2410, 288
        %vm2447 = vcmp.lt.s32.totalorder %v2411, 288
        %vm2448 = vcmp.lt.s32.totalorder %v2412, 288
        %vm2449 = vcmp.lt.s32.totalorder %v2413, 288
        %vm2450 = vcmp.lt.s32.totalorder %v2414, 288
        %vm2451 = vcmp.lt.s32.totalorder %v2415, 288
        %vm2452 = vcmp.lt.s32.totalorder %v2416, 288
        %vm2453 = vcmp.lt.s32.totalorder %v2381, 0
        %v2454 = vsub.s32 0, %v2381
        %v2455 = vsel %vm2453, %v2454, %v2381
        %v2456 = vmul.u32.u64.compose %v2455, 3817748708
        %v2457 = vextract.low.u32 %v2456
        %v2458 = vextract.high.u32 %v2456
        %v2459 = vshrl.u32 %v2458, 4
        %v2460 = vmul.u32 %v2459, 18
        %v2461 = vsub.s32 %v2455, %v2460
        %v2462 = vsub.s32 0, %v2461
        %v2463 = vsel %vm2453, %v2462, %v2461
        %vm2464 = vcmp.lt.s32.totalorder %v2382, 0
        %v2465 = vsub.s32 0, %v2382
        %v2466 = vsel %vm2464, %v2465, %v2382
        %v2467 = vmul.u32.u64.compose %v2466, 3817748708
        %v2468 = vextract.low.u32 %v2467
        %v2469 = vextract.high.u32 %v2467
        %v2470 = vshrl.u32 %v2469, 4
        %v2471 = vmul.u32 %v2470, 18
        %v2472 = vsub.s32 %v2466, %v2471
        %v2473 = vsub.s32 0, %v2472
        %v2474 = vsel %vm2464, %v2473, %v2472
        %vm2475 = vcmp.lt.s32.totalorder %v2383, 0
        %v2476 = vsub.s32 0, %v2383
        %v2477 = vsel %vm2475, %v2476, %v2383
        %v2478 = vmul.u32.u64.compose %v2477, 3817748708
        %v2479 = vextract.low.u32 %v2478
        %v2480 = vextract.high.u32 %v2478
        %v2481 = vshrl.u32 %v2480, 4
        %v2482 = vmul.u32 %v2481, 18
        %v2483 = vsub.s32 %v2477, %v2482
        %v2484 = vsub.s32 0, %v2483
        %v2485 = vsel %vm2475, %v2484, %v2483
        %vm2486 = vcmp.lt.s32.totalorder %v2384, 0
        %v2487 = vsub.s32 0, %v2384
        %v2488 = vsel %vm2486, %v2487, %v2384
        %v2489 = vmul.u32.u64.compose %v2488, 3817748708
        %v2490 = vextract.low.u32 %v2489
        %v2491 = vextract.high.u32 %v2489
        %v2492 = vshrl.u32 %v2491, 4
        %v2493 = vmul.u32 %v2492, 18
        %v2494 = vsub.s32 %v2488, %v2493
        %v2495 = vsub.s32 0, %v2494
        %v2496 = vsel %vm2486, %v2495, %v2494
        %vm2497 = vcmp.lt.s32.totalorder %v2385, 0
        %v2498 = vsub.s32 0, %v2385
        %v2499 = vsel %vm2497, %v2498, %v2385
        %v2500 = vmul.u32.u64.compose %v2499, 3817748708
        %v2501 = vextract.low.u32 %v2500
        %v2502 = vextract.high.u32 %v2500
        %v2503 = vshrl.u32 %v2502, 4
        %v2504 = vmul.u32 %v2503, 18
        %v2505 = vsub.s32 %v2499, %v2504
        %v2506 = vsub.s32 0, %v2505
        %v2507 = vsel %vm2497, %v2506, %v2505
        %vm2508 = vcmp.lt.s32.totalorder %v2386, 0
        %v2509 = vsub.s32 0, %v2386
        %v2510 = vsel %vm2508, %v2509, %v2386
        %v2511 = vmul.u32.u64.compose %v2510, 3817748708
        %v2512 = vextract.low.u32 %v2511
        %v2513 = vextract.high.u32 %v2511
        %v2514 = vshrl.u32 %v2513, 4
        %v2515 = vmul.u32 %v2514, 18
        %v2516 = vsub.s32 %v2510, %v2515
        %v2517 = vsub.s32 0, %v2516
        %v2518 = vsel %vm2508, %v2517, %v2516
        %vm2519 = vcmp.lt.s32.totalorder %v2387, 0
        %v2520 = vsub.s32 0, %v2387
        %v2521 = vsel %vm2519, %v2520, %v2387
        %v2522 = vmul.u32.u64.compose %v2521, 3817748708
        %v2523 = vextract.low.u32 %v2522
        %v2524 = vextract.high.u32 %v2522
        %v2525 = vshrl.u32 %v2524, 4
        %v2526 = vmul.u32 %v2525, 18
        %v2527 = vsub.s32 %v2521, %v2526
        %v2528 = vsub.s32 0, %v2527
        %v2529 = vsel %vm2519, %v2528, %v2527
        %vm2530 = vcmp.lt.s32.totalorder %v2388, 0
        %v2531 = vsub.s32 0, %v2388
        %v2532 = vsel %vm2530, %v2531, %v2388
        %v2533 = vmul.u32.u64.compose %v2532, 3817748708
        %v2534 = vextract.low.u32 %v2533
        %v2535 = vextract.high.u32 %v2533
        %v2536 = vshrl.u32 %v2535, 4
        %v2537 = vmul.u32 %v2536, 18
        %v2538 = vsub.s32 %v2532, %v2537
        %v2539 = vsub.s32 0, %v2538
        %v2540 = vsel %vm2530, %v2539, %v2538
        %vm2541 = vcmp.lt.s32.totalorder %v2389, 0
        %v2542 = vsub.s32 0, %v2389
        %v2543 = vsel %vm2541, %v2542, %v2389
        %v2544 = vmul.u32.u64.compose %v2543, 3817748708
        %v2545 = vextract.low.u32 %v2544
        %v2546 = vextract.high.u32 %v2544
        %v2547 = vshrl.u32 %v2546, 4
        %v2548 = vmul.u32 %v2547, 18
        %v2549 = vsub.s32 %v2543, %v2548
        %v2550 = vsub.s32 0, %v2549
        %v2551 = vsel %vm2541, %v2550, %v2549
        %vm2552 = vcmp.lt.s32.totalorder %v2390, 0
        %v2553 = vsub.s32 0, %v2390
        %v2554 = vsel %vm2552, %v2553, %v2390
        %v2555 = vmul.u32.u64.compose %v2554, 3817748708
        %v2556 = vextract.low.u32 %v2555
        %v2557 = vextract.high.u32 %v2555
        %v2558 = vshrl.u32 %v2557, 4
        %v2559 = vmul.u32 %v2558, 18
        %v2560 = vsub.s32 %v2554, %v2559
        %v2561 = vsub.s32 0, %v2560
        %v2562 = vsel %vm2552, %v2561, %v2560
        %vm2563 = vcmp.lt.s32.totalorder %v2391, 0
        %v2564 = vsub.s32 0, %v2391
        %v2565 = vsel %vm2563, %v2564, %v2391
        %v2566 = vmul.u32.u64.compose %v2565, 3817748708
        %v2567 = vextract.low.u32 %v2566
        %v2568 = vextract.high.u32 %v2566
        %v2569 = vshrl.u32 %v2568, 4
        %v2570 = vmul.u32 %v2569, 18
        %v2571 = vsub.s32 %v2565, %v2570
        %v2572 = vsub.s32 0, %v2571
        %v2573 = vsel %vm2563, %v2572, %v2571
        %vm2574 = vcmp.lt.s32.totalorder %v2392, 0
        %v2575 = vsub.s32 0, %v2392
        %v2576 = vsel %vm2574, %v2575, %v2392
        %v2577 = vmul.u32.u64.compose %v2576, 3817748708
        %v2578 = vextract.low.u32 %v2577
        %v2579 = vextract.high.u32 %v2577
        %v2580 = vshrl.u32 %v2579, 4
        %v2581 = vmul.u32 %v2580, 18
        %v2582 = vsub.s32 %v2576, %v2581
        %v2583 = vsub.s32 0, %v2582
        %v2584 = vsel %vm2574, %v2583, %v2582
        %vm2585 = vcmp.lt.s32.totalorder %v2393, 0
        %v2586 = vsub.s32 0, %v2393
        %v2587 = vsel %vm2585, %v2586, %v2393
        %v2588 = vmul.u32.u64.compose %v2587, 3817748708
        %v2589 = vextract.low.u32 %v2588
        %v2590 = vextract.high.u32 %v2588
        %v2591 = vshrl.u32 %v2590, 4
        %v2592 = vmul.u32 %v2591, 18
        %v2593 = vsub.s32 %v2587, %v2592
        %v2594 = vsub.s32 0, %v2593
        %v2595 = vsel %vm2585, %v2594, %v2593
        %vm2596 = vcmp.lt.s32.totalorder %v2394, 0
        %v2597 = vsub.s32 0, %v2394
        %v2598 = vsel %vm2596, %v2597, %v2394
        %v2599 = vmul.u32.u64.compose %v2598, 3817748708
        %v2600 = vextract.low.u32 %v2599
        %v2601 = vextract.high.u32 %v2599
        %v2602 = vshrl.u32 %v2601, 4
        %v2603 = vmul.u32 %v2602, 18
        %v2604 = vsub.s32 %v2598, %v2603
        %v2605 = vsub.s32 0, %v2604
        %v2606 = vsel %vm2596, %v2605, %v2604
        %vm2607 = vcmp.lt.s32.totalorder %v2395, 0
        %v2608 = vsub.s32 0, %v2395
        %v2609 = vsel %vm2607, %v2608, %v2395
        %v2610 = vmul.u32.u64.compose %v2609, 3817748708
        %v2611 = vextract.low.u32 %v2610
        %v2612 = vextract.high.u32 %v2610
        %v2613 = vshrl.u32 %v2612, 4
        %v2614 = vmul.u32 %v2613, 18
        %v2615 = vsub.s32 %v2609, %v2614
        %v2616 = vsub.s32 0, %v2615
        %v2617 = vsel %vm2607, %v2616, %v2615
        %vm2618 = vcmp.lt.s32.totalorder %v2396, 0
        %v2619 = vsub.s32 0, %v2396
        %v2620 = vsel %vm2618, %v2619, %v2396
        %v2621 = vmul.u32.u64.compose %v2620, 3817748708
        %v2622 = vextract.low.u32 %v2621
        %v2623 = vextract.high.u32 %v2621
        %v2624 = vshrl.u32 %v2623, 4
        %v2625 = vmul.u32 %v2624, 18
        %v2626 = vsub.s32 %v2620, %v2625
        %v2627 = vsub.s32 0, %v2626
        %v2628 = vsel %vm2618, %v2627, %v2626
        %vm2629 = vcmp.lt.s32.totalorder %v2397, 0
        %v2630 = vsub.s32 0, %v2397
        %v2631 = vsel %vm2629, %v2630, %v2397
        %v2632 = vmul.u32.u64.compose %v2631, 3817748708
        %v2633 = vextract.low.u32 %v2632
        %v2634 = vextract.high.u32 %v2632
        %v2635 = vshrl.u32 %v2634, 4
        %v2636 = vmul.u32 %v2635, 18
        %v2637 = vsub.s32 %v2631, %v2636
        %v2638 = vsub.s32 0, %v2637
        %v2639 = vsel %vm2629, %v2638, %v2637
        %vm2640 = vcmp.lt.s32.totalorder %v2398, 0
        %v2641 = vsub.s32 0, %v2398
        %v2642 = vsel %vm2640, %v2641, %v2398
        %v2643 = vmul.u32.u64.compose %v2642, 3817748708
        %v2644 = vextract.low.u32 %v2643
        %v2645 = vextract.high.u32 %v2643
        %v2646 = vshrl.u32 %v2645, 4
        %v2647 = vmul.u32 %v2646, 18
        %v2648 = vsub.s32 %v2642, %v2647
        %v2649 = vsub.s32 0, %v2648
        %v2650 = vsel %vm2640, %v2649, %v2648
        %vm2651 = vcmp.lt.s32.totalorder %v2399, 0
        %v2652 = vsub.s32 0, %v2399
        %v2653 = vsel %vm2651, %v2652, %v2399
        %v2654 = vmul.u32.u64.compose %v2653, 3817748708
        %v2655 = vextract.low.u32 %v2654
        %v2656 = vextract.high.u32 %v2654
        %v2657 = vshrl.u32 %v2656, 4
        %v2658 = vmul.u32 %v2657, 18
        %v2659 = vsub.s32 %v2653, %v2658
        %v2660 = vsub.s32 0, %v2659
        %v2661 = vsel %vm2651, %v2660, %v2659
        %vm2662 = vcmp.lt.s32.totalorder %v2400, 0
        %v2663 = vsub.s32 0, %v2400
        %v2664 = vsel %vm2662, %v2663, %v2400
        %v2665 = vmul.u32.u64.compose %v2664, 3817748708
        %v2666 = vextract.low.u32 %v2665
        %v2667 = vextract.high.u32 %v2665
        %v2668 = vshrl.u32 %v2667, 4
        %v2669 = vmul.u32 %v2668, 18
        %v2670 = vsub.s32 %v2664, %v2669
        %v2671 = vsub.s32 0, %v2670
        %v2672 = vsel %vm2662, %v2671, %v2670
        %vm2673 = vcmp.lt.s32.totalorder %v2401, 0
        %v2674 = vsub.s32 0, %v2401
        %v2675 = vsel %vm2673, %v2674, %v2401
        %v2676 = vmul.u32.u64.compose %v2675, 3817748708
        %v2677 = vextract.low.u32 %v2676
        %v2678 = vextract.high.u32 %v2676
        %v2679 = vshrl.u32 %v2678, 4
        %v2680 = vmul.u32 %v2679, 18
        %v2681 = vsub.s32 %v2675, %v2680
        %v2682 = vsub.s32 0, %v2681
        %v2683 = vsel %vm2673, %v2682, %v2681
        %vm2684 = vcmp.lt.s32.totalorder %v2402, 0
        %v2685 = vsub.s32 0, %v2402
        %v2686 = vsel %vm2684, %v2685, %v2402
        %v2687 = vmul.u32.u64.compose %v2686, 3817748708
        %v2688 = vextract.low.u32 %v2687
        %v2689 = vextract.high.u32 %v2687
        %v2690 = vshrl.u32 %v2689, 4
        %v2691 = vmul.u32 %v2690, 18
        %v2692 = vsub.s32 %v2686, %v2691
        %v2693 = vsub.s32 0, %v2692
        %v2694 = vsel %vm2684, %v2693, %v2692
        %vm2695 = vcmp.lt.s32.totalorder %v2403, 0
        %v2696 = vsub.s32 0, %v2403
        %v2697 = vsel %vm2695, %v2696, %v2403
        %v2698 = vmul.u32.u64.compose %v2697, 3817748708
        %v2699 = vextract.low.u32 %v2698
        %v2700 = vextract.high.u32 %v2698
        %v2701 = vshrl.u32 %v2700, 4
        %v2702 = vmul.u32 %v2701, 18
        %v2703 = vsub.s32 %v2697, %v2702
        %v2704 = vsub.s32 0, %v2703
        %v2705 = vsel %vm2695, %v2704, %v2703
        %vm2706 = vcmp.lt.s32.totalorder %v2404, 0
        %v2707 = vsub.s32 0, %v2404
        %v2708 = vsel %vm2706, %v2707, %v2404
        %v2709 = vmul.u32.u64.compose %v2708, 3817748708
        %v2710 = vextract.low.u32 %v2709
        %v2711 = vextract.high.u32 %v2709
        %v2712 = vshrl.u32 %v2711, 4
        %v2713 = vmul.u32 %v2712, 18
        %v2714 = vsub.s32 %v2708, %v2713
        %v2715 = vsub.s32 0, %v2714
        %v2716 = vsel %vm2706, %v2715, %v2714
        %vm2717 = vcmp.lt.s32.totalorder %v2405, 0
        %v2718 = vsub.s32 0, %v2405
        %v2719 = vsel %vm2717, %v2718, %v2405
        %v2720 = vmul.u32.u64.compose %v2719, 3817748708
        %v2721 = vextract.low.u32 %v2720
        %v2722 = vextract.high.u32 %v2720
        %v2723 = vshrl.u32 %v2722, 4
        %v2724 = vmul.u32 %v2723, 18
        %v2725 = vsub.s32 %v2719, %v2724
        %v2726 = vsub.s32 0, %v2725
        %v2727 = vsel %vm2717, %v2726, %v2725
        %vm2728 = vcmp.lt.s32.totalorder %v2406, 0
        %v2729 = vsub.s32 0, %v2406
        %v2730 = vsel %vm2728, %v2729, %v2406
        %v2731 = vmul.u32.u64.compose %v2730, 3817748708
        %v2732 = vextract.low.u32 %v2731
        %v2733 = vextract.high.u32 %v2731
        %v2734 = vshrl.u32 %v2733, 4
        %v2735 = vmul.u32 %v2734, 18
        %v2736 = vsub.s32 %v2730, %v2735
        %v2737 = vsub.s32 0, %v2736
        %v2738 = vsel %vm2728, %v2737, %v2736
        %vm2739 = vcmp.lt.s32.totalorder %v2407, 0
        %v2740 = vsub.s32 0, %v2407
        %v2741 = vsel %vm2739, %v2740, %v2407
        %v2742 = vmul.u32.u64.compose %v2741, 3817748708
        %v2743 = vextract.low.u32 %v2742
        %v2744 = vextract.high.u32 %v2742
        %v2745 = vshrl.u32 %v2744, 4
        %v2746 = vmul.u32 %v2745, 18
        %v2747 = vsub.s32 %v2741, %v2746
        %v2748 = vsub.s32 0, %v2747
        %v2749 = vsel %vm2739, %v2748, %v2747
        %vm2750 = vcmp.lt.s32.totalorder %v2408, 0
        %v2751 = vsub.s32 0, %v2408
        %v2752 = vsel %vm2750, %v2751, %v2408
        %v2753 = vmul.u32.u64.compose %v2752, 3817748708
        %v2754 = vextract.low.u32 %v2753
        %v2755 = vextract.high.u32 %v2753
        %v2756 = vshrl.u32 %v2755, 4
        %v2757 = vmul.u32 %v2756, 18
        %v2758 = vsub.s32 %v2752, %v2757
        %v2759 = vsub.s32 0, %v2758
        %v2760 = vsel %vm2750, %v2759, %v2758
        %vm2761 = vcmp.lt.s32.totalorder %v2409, 0
        %v2762 = vsub.s32 0, %v2409
        %v2763 = vsel %vm2761, %v2762, %v2409
        %v2764 = vmul.u32.u64.compose %v2763, 3817748708
        %v2765 = vextract.low.u32 %v2764
        %v2766 = vextract.high.u32 %v2764
        %v2767 = vshrl.u32 %v2766, 4
        %v2768 = vmul.u32 %v2767, 18
        %v2769 = vsub.s32 %v2763, %v2768
        %v2770 = vsub.s32 0, %v2769
        %v2771 = vsel %vm2761, %v2770, %v2769
        %vm2772 = vcmp.lt.s32.totalorder %v2410, 0
        %v2773 = vsub.s32 0, %v2410
        %v2774 = vsel %vm2772, %v2773, %v2410
        %v2775 = vmul.u32.u64.compose %v2774, 3817748708
        %v2776 = vextract.low.u32 %v2775
        %v2777 = vextract.high.u32 %v2775
        %v2778 = vshrl.u32 %v2777, 4
        %v2779 = vmul.u32 %v2778, 18
        %v2780 = vsub.s32 %v2774, %v2779
        %v2781 = vsub.s32 0, %v2780
        %v2782 = vsel %vm2772, %v2781, %v2780
        %vm2783 = vcmp.lt.s32.totalorder %v2411, 0
        %v2784 = vsub.s32 0, %v2411
        %v2785 = vsel %vm2783, %v2784, %v2411
        %v2786 = vmul.u32.u64.compose %v2785, 3817748708
        %v2787 = vextract.low.u32 %v2786
        %v2788 = vextract.high.u32 %v2786
        %v2789 = vshrl.u32 %v2788, 4
        %v2790 = vmul.u32 %v2789, 18
        %v2791 = vsub.s32 %v2785, %v2790
        %v2792 = vsub.s32 0, %v2791
        %v2793 = vsel %vm2783, %v2792, %v2791
        %vm2794 = vcmp.lt.s32.totalorder %v2412, 0
        %v2795 = vsub.s32 0, %v2412
        %v2796 = vsel %vm2794, %v2795, %v2412
        %v2797 = vmul.u32.u64.compose %v2796, 3817748708
        %v2798 = vextract.low.u32 %v2797
        %v2799 = vextract.high.u32 %v2797
        %v2800 = vshrl.u32 %v2799, 4
        %v2801 = vmul.u32 %v2800, 18
        %v2802 = vsub.s32 %v2796, %v2801
        %v2803 = vsub.s32 0, %v2802
        %v2804 = vsel %vm2794, %v2803, %v2802
        %vm2805 = vcmp.lt.s32.totalorder %v2413, 0
        %v2806 = vsub.s32 0, %v2413
        %v2807 = vsel %vm2805, %v2806, %v2413
        %v2808 = vmul.u32.u64.compose %v2807, 3817748708
        %v2809 = vextract.low.u32 %v2808
        %v2810 = vextract.high.u32 %v2808
        %v2811 = vshrl.u32 %v2810, 4
        %v2812 = vmul.u32 %v2811, 18
        %v2813 = vsub.s32 %v2807, %v2812
        %v2814 = vsub.s32 0, %v2813
        %v2815 = vsel %vm2805, %v2814, %v2813
        %vm2816 = vcmp.lt.s32.totalorder %v2414, 0
        %v2817 = vsub.s32 0, %v2414
        %v2818 = vsel %vm2816, %v2817, %v2414
        %v2819 = vmul.u32.u64.compose %v2818, 3817748708
        %v2820 = vextract.low.u32 %v2819
        %v2821 = vextract.high.u32 %v2819
        %v2822 = vshrl.u32 %v2821, 4
        %v2823 = vmul.u32 %v2822, 18
        %v2824 = vsub.s32 %v2818, %v2823
        %v2825 = vsub.s32 0, %v2824
        %v2826 = vsel %vm2816, %v2825, %v2824
        %vm2827 = vcmp.lt.s32.totalorder %v2415, 0
        %v2828 = vsub.s32 0, %v2415
        %v2829 = vsel %vm2827, %v2828, %v2415
        %v2830 = vmul.u32.u64.compose %v2829, 3817748708
        %v2831 = vextract.low.u32 %v2830
        %v2832 = vextract.high.u32 %v2830
        %v2833 = vshrl.u32 %v2832, 4
        %v2834 = vmul.u32 %v2833, 18
        %v2835 = vsub.s32 %v2829, %v2834
        %v2836 = vsub.s32 0, %v2835
        %v2837 = vsel %vm2827, %v2836, %v2835
        %vm2838 = vcmp.lt.s32.totalorder %v2416, 0
        %v2839 = vsub.s32 0, %v2416
        %v2840 = vsel %vm2838, %v2839, %v2416
        %v2841 = vmul.u32.u64.compose %v2840, 3817748708
        %v2842 = vextract.low.u32 %v2841
        %v2843 = vextract.high.u32 %v2841
        %v2844 = vshrl.u32 %v2843, 4
        %v2845 = vmul.u32 %v2844, 18
        %v2846 = vsub.s32 %v2840, %v2845
        %v2847 = vsub.s32 0, %v2846
        %v2848 = vsel %vm2838, %v2847, %v2846
        %vm2849 = vcmp.ne.s32.totalorder %v2463, 0
        %vm2850 = vcmp.ne.s32.totalorder %v2474, 0
        %vm2851 = vcmp.ne.s32.totalorder %v2485, 0
        %vm2852 = vcmp.ne.s32.totalorder %v2496, 0
        %vm2853 = vcmp.ne.s32.totalorder %v2507, 0
        %vm2854 = vcmp.ne.s32.totalorder %v2518, 0
        %vm2855 = vcmp.ne.s32.totalorder %v2529, 0
        %vm2856 = vcmp.ne.s32.totalorder %v2540, 0
        %vm2857 = vcmp.ne.s32.totalorder %v2551, 0
        %vm2858 = vcmp.ne.s32.totalorder %v2562, 0
        %vm2859 = vcmp.ne.s32.totalorder %v2573, 0
        %vm2860 = vcmp.ne.s32.totalorder %v2584, 0
        %vm2861 = vcmp.ne.s32.totalorder %v2595, 0
        %vm2862 = vcmp.ne.s32.totalorder %v2606, 0
        %vm2863 = vcmp.ne.s32.totalorder %v2617, 0
        %vm2864 = vcmp.ne.s32.totalorder %v2628, 0
        %vm2865 = vcmp.ne.s32.totalorder %v2639, 0
        %vm2866 = vcmp.ne.s32.totalorder %v2650, 0
        %vm2867 = vcmp.ne.s32.totalorder %v2661, 0
        %vm2868 = vcmp.ne.s32.totalorder %v2672, 0
        %vm2869 = vcmp.ne.s32.totalorder %v2683, 0
        %vm2870 = vcmp.ne.s32.totalorder %v2694, 0
        %vm2871 = vcmp.ne.s32.totalorder %v2705, 0
        %vm2872 = vcmp.ne.s32.totalorder %v2716, 0
        %vm2873 = vcmp.ne.s32.totalorder %v2727, 0
        %vm2874 = vcmp.ne.s32.totalorder %v2738, 0
        %vm2875 = vcmp.ne.s32.totalorder %v2749, 0
        %vm2876 = vcmp.ne.s32.totalorder %v2760, 0
        %vm2877 = vcmp.ne.s32.totalorder %v2771, 0
        %vm2878 = vcmp.ne.s32.totalorder %v2782, 0
        %vm2879 = vcmp.ne.s32.totalorder %v2793, 0
        %vm2880 = vcmp.ne.s32.totalorder %v2804, 0
        %vm2881 = vcmp.ne.s32.totalorder %v2815, 0
        %vm2882 = vcmp.ne.s32.totalorder %v2826, 0
        %vm2883 = vcmp.ne.s32.totalorder %v2837, 0
        %vm2884 = vcmp.ne.s32.totalorder %v2848, 0
        %vm2885 = vcmp.lt.s32.totalorder %v2463, 0
        %vm2886 = vcmp.lt.s32.totalorder %v2474, 0
        %vm2887 = vcmp.lt.s32.totalorder %v2485, 0
        %vm2888 = vcmp.lt.s32.totalorder %v2496, 0
        %vm2889 = vcmp.lt.s32.totalorder %v2507, 0
        %vm2890 = vcmp.lt.s32.totalorder %v2518, 0
        %vm2891 = vcmp.lt.s32.totalorder %v2529, 0
        %vm2892 = vcmp.lt.s32.totalorder %v2540, 0
        %vm2893 = vcmp.lt.s32.totalorder %v2551, 0
        %vm2894 = vcmp.lt.s32.totalorder %v2562, 0
        %vm2895 = vcmp.lt.s32.totalorder %v2573, 0
        %vm2896 = vcmp.lt.s32.totalorder %v2584, 0
        %vm2897 = vcmp.lt.s32.totalorder %v2595, 0
        %vm2898 = vcmp.lt.s32.totalorder %v2606, 0
        %vm2899 = vcmp.lt.s32.totalorder %v2617, 0
        %vm2900 = vcmp.lt.s32.totalorder %v2628, 0
        %vm2901 = vcmp.lt.s32.totalorder %v2639, 0
        %vm2902 = vcmp.lt.s32.totalorder %v2650, 0
        %vm2903 = vcmp.lt.s32.totalorder %v2661, 0
        %vm2904 = vcmp.lt.s32.totalorder %v2672, 0
        %vm2905 = vcmp.lt.s32.totalorder %v2683, 0
        %vm2906 = vcmp.lt.s32.totalorder %v2694, 0
        %vm2907 = vcmp.lt.s32.totalorder %v2705, 0
        %vm2908 = vcmp.lt.s32.totalorder %v2716, 0
        %vm2909 = vcmp.lt.s32.totalorder %v2727, 0
        %vm2910 = vcmp.lt.s32.totalorder %v2738, 0
        %vm2911 = vcmp.lt.s32.totalorder %v2749, 0
        %vm2912 = vcmp.lt.s32.totalorder %v2760, 0
        %vm2913 = vcmp.lt.s32.totalorder %v2771, 0
        %vm2914 = vcmp.lt.s32.totalorder %v2782, 0
        %vm2915 = vcmp.lt.s32.totalorder %v2793, 0
        %vm2916 = vcmp.lt.s32.totalorder %v2804, 0
        %vm2917 = vcmp.lt.s32.totalorder %v2815, 0
        %vm2918 = vcmp.lt.s32.totalorder %v2826, 0
        %vm2919 = vcmp.lt.s32.totalorder %v2837, 0
        %vm2920 = vcmp.lt.s32.totalorder %v2848, 0
        %vm2921 = vmand %vm2885, %vm2849
        %vm2922 = vmand %vm2886, %vm2850
        %vm2923 = vmand %vm2887, %vm2851
        %vm2924 = vmand %vm2888, %vm2852
        %vm2925 = vmand %vm2889, %vm2853
        %vm2926 = vmand %vm2890, %vm2854
        %vm2927 = vmand %vm2891, %vm2855
        %vm2928 = vmand %vm2892, %vm2856
        %vm2929 = vmand %vm2893, %vm2857
        %vm2930 = vmand %vm2894, %vm2858
        %vm2931 = vmand %vm2895, %vm2859
        %vm2932 = vmand %vm2896, %vm2860
        %vm2933 = vmand %vm2897, %vm2861
        %vm2934 = vmand %vm2898, %vm2862
        %vm2935 = vmand %vm2899, %vm2863
        %vm2936 = vmand %vm2900, %vm2864
        %vm2937 = vmand %vm2901, %vm2865
        %vm2938 = vmand %vm2902, %vm2866
        %vm2939 = vmand %vm2903, %vm2867
        %vm2940 = vmand %vm2904, %vm2868
        %vm2941 = vmand %vm2905, %vm2869
        %vm2942 = vmand %vm2906, %vm2870
        %vm2943 = vmand %vm2907, %vm2871
        %vm2944 = vmand %vm2908, %vm2872
        %vm2945 = vmand %vm2909, %vm2873
        %vm2946 = vmand %vm2910, %vm2874
        %vm2947 = vmand %vm2911, %vm2875
        %vm2948 = vmand %vm2912, %vm2876
        %vm2949 = vmand %vm2913, %vm2877
        %vm2950 = vmand %vm2914, %vm2878
        %vm2951 = vmand %vm2915, %vm2879
        %vm2952 = vmand %vm2916, %vm2880
        %vm2953 = vmand %vm2917, %vm2881
        %vm2954 = vmand %vm2918, %vm2882
        %vm2955 = vmand %vm2919, %vm2883
        %vm2956 = vmand %vm2920, %vm2884
        %v2957 = vadd.s32 %v2463, 18
        %v2958 = vadd.s32 %v2474, 18
        %v2959 = vadd.s32 %v2485, 18
        %v2960 = vadd.s32 %v2496, 18
        %v2961 = vadd.s32 %v2507, 18
        %v2962 = vadd.s32 %v2518, 18
        %v2963 = vadd.s32 %v2529, 18
        %v2964 = vadd.s32 %v2540, 18
        %v2965 = vadd.s32 %v2551, 18
        %v2966 = vadd.s32 %v2562, 18
        %v2967 = vadd.s32 %v2573, 18
        %v2968 = vadd.s32 %v2584, 18
        %v2969 = vadd.s32 %v2595, 18
        %v2970 = vadd.s32 %v2606, 18
        %v2971 = vadd.s32 %v2617, 18
        %v2972 = vadd.s32 %v2628, 18
        %v2973 = vadd.s32 %v2639, 18
        %v2974 = vadd.s32 %v2650, 18
        %v2975 = vadd.s32 %v2661, 18
        %v2976 = vadd.s32 %v2672, 18
        %v2977 = vadd.s32 %v2683, 18
        %v2978 = vadd.s32 %v2694, 18
        %v2979 = vadd.s32 %v2705, 18
        %v2980 = vadd.s32 %v2716, 18
        %v2981 = vadd.s32 %v2727, 18
        %v2982 = vadd.s32 %v2738, 18
        %v2983 = vadd.s32 %v2749, 18
        %v2984 = vadd.s32 %v2760, 18
        %v2985 = vadd.s32 %v2771, 18
        %v2986 = vadd.s32 %v2782, 18
        %v2987 = vadd.s32 %v2793, 18
        %v2988 = vadd.s32 %v2804, 18
        %v2989 = vadd.s32 %v2815, 18
        %v2990 = vadd.s32 %v2826, 18
        %v2991 = vadd.s32 %v2837, 18
        %v2992 = vadd.s32 %v2848, 18
        %v2993 = vsel %vm2921, %v2957, %v2463
        %v2994 = vsel %vm2922, %v2958, %v2474
        %v2995 = vsel %vm2923, %v2959, %v2485
        %v2996 = vsel %vm2924, %v2960, %v2496
        %v2997 = vsel %vm2925, %v2961, %v2507
        %v2998 = vsel %vm2926, %v2962, %v2518
        %v2999 = vsel %vm2927, %v2963, %v2529
        %v3000 = vsel %vm2928, %v2964, %v2540
        %v3001 = vsel %vm2929, %v2965, %v2551
        %v3002 = vsel %vm2930, %v2966, %v2562
        %v3003 = vsel %vm2931, %v2967, %v2573
        %v3004 = vsel %vm2932, %v2968, %v2584
        %v3005 = vsel %vm2933, %v2969, %v2595
        %v3006 = vsel %vm2934, %v2970, %v2606
        %v3007 = vsel %vm2935, %v2971, %v2617
        %v3008 = vsel %vm2936, %v2972, %v2628
        %v3009 = vsel %vm2937, %v2973, %v2639
        %v3010 = vsel %vm2938, %v2974, %v2650
        %v3011 = vsel %vm2939, %v2975, %v2661
        %v3012 = vsel %vm2940, %v2976, %v2672
        %v3013 = vsel %vm2941, %v2977, %v2683
        %v3014 = vsel %vm2942, %v2978, %v2694
        %v3015 = vsel %vm2943, %v2979, %v2705
        %v3016 = vsel %vm2944, %v2980, %v2716
        %v3017 = vsel %vm2945, %v2981, %v2727
        %v3018 = vsel %vm2946, %v2982, %v2738
        %v3019 = vsel %vm2947, %v2983, %v2749
        %v3020 = vsel %vm2948, %v2984, %v2760
        %v3021 = vsel %vm2949, %v2985, %v2771
        %v3022 = vsel %vm2950, %v2986, %v2782
        %v3023 = vsel %vm2951, %v2987, %v2793
        %v3024 = vsel %vm2952, %v2988, %v2804
        %v3025 = vsel %vm2953, %v2989, %v2815
        %v3026 = vsel %vm2954, %v2990, %v2826
        %v3027 = vsel %vm2955, %v2991, %v2837
        %v3028 = vsel %vm2956, %v2992, %v2848
        %vm3029 = vcmp.lt.s32.totalorder %v2993, 16
        %vm3030 = vcmp.lt.s32.totalorder %v2994, 16
        %vm3031 = vcmp.lt.s32.totalorder %v2995, 16
        %vm3032 = vcmp.lt.s32.totalorder %v2996, 16
        %vm3033 = vcmp.lt.s32.totalorder %v2997, 16
        %vm3034 = vcmp.lt.s32.totalorder %v2998, 16
        %vm3035 = vcmp.lt.s32.totalorder %v2999, 16
        %vm3036 = vcmp.lt.s32.totalorder %v3000, 16
        %vm3037 = vcmp.lt.s32.totalorder %v3001, 16
        %vm3038 = vcmp.lt.s32.totalorder %v3002, 16
        %vm3039 = vcmp.lt.s32.totalorder %v3003, 16
        %vm3040 = vcmp.lt.s32.totalorder %v3004, 16
        %vm3041 = vcmp.lt.s32.totalorder %v3005, 16
        %vm3042 = vcmp.lt.s32.totalorder %v3006, 16
        %vm3043 = vcmp.lt.s32.totalorder %v3007, 16
        %vm3044 = vcmp.lt.s32.totalorder %v3008, 16
        %vm3045 = vcmp.lt.s32.totalorder %v3009, 16
        %vm3046 = vcmp.lt.s32.totalorder %v3010, 16
        %vm3047 = vcmp.lt.s32.totalorder %v3011, 16
        %vm3048 = vcmp.lt.s32.totalorder %v3012, 16
        %vm3049 = vcmp.lt.s32.totalorder %v3013, 16
        %vm3050 = vcmp.lt.s32.totalorder %v3014, 16
        %vm3051 = vcmp.lt.s32.totalorder %v3015, 16
        %vm3052 = vcmp.lt.s32.totalorder %v3016, 16
        %vm3053 = vcmp.lt.s32.totalorder %v3017, 16
        %vm3054 = vcmp.lt.s32.totalorder %v3018, 16
        %vm3055 = vcmp.lt.s32.totalorder %v3019, 16
        %vm3056 = vcmp.lt.s32.totalorder %v3020, 16
        %vm3057 = vcmp.lt.s32.totalorder %v3021, 16
        %vm3058 = vcmp.lt.s32.totalorder %v3022, 16
        %vm3059 = vcmp.lt.s32.totalorder %v3023, 16
        %vm3060 = vcmp.lt.s32.totalorder %v3024, 16
        %vm3061 = vcmp.lt.s32.totalorder %v3025, 16
        %vm3062 = vcmp.lt.s32.totalorder %v3026, 16
        %vm3063 = vcmp.lt.s32.totalorder %v3027, 16
        %vm3064 = vcmp.lt.s32.totalorder %v3028, 16
        %vm3065 = vmand %vm2417, %vm3029
        %vm3066 = vmand %vm2418, %vm3030
        %vm3067 = vmand %vm2419, %vm3031
        %vm3068 = vmand %vm2420, %vm3032
        %vm3069 = vmand %vm2421, %vm3033
        %vm3070 = vmand %vm2422, %vm3034
        %vm3071 = vmand %vm2423, %vm3035
        %vm3072 = vmand %vm2424, %vm3036
        %vm3073 = vmand %vm2425, %vm3037
        %vm3074 = vmand %vm2426, %vm3038
        %vm3075 = vmand %vm2427, %vm3039
        %vm3076 = vmand %vm2428, %vm3040
        %vm3077 = vmand %vm2429, %vm3041
        %vm3078 = vmand %vm2430, %vm3042
        %vm3079 = vmand %vm2431, %vm3043
        %vm3080 = vmand %vm2432, %vm3044
        %vm3081 = vmand %vm2433, %vm3045
        %vm3082 = vmand %vm2434, %vm3046
        %vm3083 = vmand %vm2435, %vm3047
        %vm3084 = vmand %vm2436, %vm3048
        %vm3085 = vmand %vm2437, %vm3049
        %vm3086 = vmand %vm2438, %vm3050
        %vm3087 = vmand %vm2439, %vm3051
        %vm3088 = vmand %vm2440, %vm3052
        %vm3089 = vmand %vm2441, %vm3053
        %vm3090 = vmand %vm2442, %vm3054
        %vm3091 = vmand %vm2443, %vm3055
        %vm3092 = vmand %vm2444, %vm3056
        %vm3093 = vmand %vm2445, %vm3057
        %vm3094 = vmand %vm2446, %vm3058
        %vm3095 = vmand %vm2447, %vm3059
        %vm3096 = vmand %vm2448, %vm3060
        %vm3097 = vmand %vm2449, %vm3061
        %vm3098 = vmand %vm2450, %vm3062
        %vm3099 = vmand %vm2451, %vm3063
        %vm3100 = vmand %vm2452, %vm3064
        %v3101 = vsel %vm3065, 1, 0
        %v3102 = vsel %vm3066, 1, 0
        %v3103 = vsel %vm3067, 1, 0
        %v3104 = vsel %vm3068, 1, 0
        %v3105 = vsel %vm3069, 1, 0
        %v3106 = vsel %vm3070, 1, 0
        %v3107 = vsel %vm3071, 1, 0
        %v3108 = vsel %vm3072, 1, 0
        %v3109 = vsel %vm3073, 1, 0
        %v3110 = vsel %vm3074, 1, 0
        %v3111 = vsel %vm3075, 1, 0
        %v3112 = vsel %vm3076, 1, 0
        %v3113 = vsel %vm3077, 1, 0
        %v3114 = vsel %vm3078, 1, 0
        %v3115 = vsel %vm3079, 1, 0
        %v3116 = vsel %vm3080, 1, 0
        %v3117 = vsel %vm3081, 1, 0
        %v3118 = vsel %vm3082, 1, 0
        %v3119 = vsel %vm3083, 1, 0
        %v3120 = vsel %vm3084, 1, 0
        %v3121 = vsel %vm3085, 1, 0
        %v3122 = vsel %vm3086, 1, 0
        %v3123 = vsel %vm3087, 1, 0
        %v3124 = vsel %vm3088, 1, 0
        %v3125 = vsel %vm3089, 1, 0
        %v3126 = vsel %vm3090, 1, 0
        %v3127 = vsel %vm3091, 1, 0
        %v3128 = vsel %vm3092, 1, 0
        %v3129 = vsel %vm3093, 1, 0
        %v3130 = vsel %vm3094, 1, 0
        %v3131 = vsel %vm3095, 1, 0
        %v3132 = vsel %vm3096, 1, 0
        %v3133 = vsel %vm3097, 1, 0
        %v3134 = vsel %vm3098, 1, 0
        %v3135 = vsel %vm3099, 1, 0
        %v3136 = vsel %vm3100, 1, 0
        %vm3137 = vcmp.eq.s32.totalorder %v3101, 1
        %vm3138 = vcmp.eq.s32.totalorder %v3102, 1
        %vm3139 = vcmp.eq.s32.totalorder %v3103, 1
        %vm3140 = vcmp.eq.s32.totalorder %v3104, 1
        %vm3141 = vcmp.eq.s32.totalorder %v3105, 1
        %vm3142 = vcmp.eq.s32.totalorder %v3106, 1
        %vm3143 = vcmp.eq.s32.totalorder %v3107, 1
        %vm3144 = vcmp.eq.s32.totalorder %v3108, 1
        %vm3145 = vcmp.eq.s32.totalorder %v3109, 1
        %vm3146 = vcmp.eq.s32.totalorder %v3110, 1
        %vm3147 = vcmp.eq.s32.totalorder %v3111, 1
        %vm3148 = vcmp.eq.s32.totalorder %v3112, 1
        %vm3149 = vcmp.eq.s32.totalorder %v3113, 1
        %vm3150 = vcmp.eq.s32.totalorder %v3114, 1
        %vm3151 = vcmp.eq.s32.totalorder %v3115, 1
        %vm3152 = vcmp.eq.s32.totalorder %v3116, 1
        %vm3153 = vcmp.eq.s32.totalorder %v3117, 1
        %vm3154 = vcmp.eq.s32.totalorder %v3118, 1
        %vm3155 = vcmp.eq.s32.totalorder %v3119, 1
        %vm3156 = vcmp.eq.s32.totalorder %v3120, 1
        %vm3157 = vcmp.eq.s32.totalorder %v3121, 1
        %vm3158 = vcmp.eq.s32.totalorder %v3122, 1
        %vm3159 = vcmp.eq.s32.totalorder %v3123, 1
        %vm3160 = vcmp.eq.s32.totalorder %v3124, 1
        %vm3161 = vcmp.eq.s32.totalorder %v3125, 1
        %vm3162 = vcmp.eq.s32.totalorder %v3126, 1
        %vm3163 = vcmp.eq.s32.totalorder %v3127, 1
        %vm3164 = vcmp.eq.s32.totalorder %v3128, 1
        %vm3165 = vcmp.eq.s32.totalorder %v3129, 1
        %vm3166 = vcmp.eq.s32.totalorder %v3130, 1
        %vm3167 = vcmp.eq.s32.totalorder %v3131, 1
        %vm3168 = vcmp.eq.s32.totalorder %v3132, 1
        %vm3169 = vcmp.eq.s32.totalorder %v3133, 1
        %vm3170 = vcmp.eq.s32.totalorder %v3134, 1
        %vm3171 = vcmp.eq.s32.totalorder %v3135, 1
        %vm3172 = vcmp.eq.s32.totalorder %v3136, 1
        %v3173 = vsel %vm3137, %v2165, 0.0
        %v3174 = vsel %vm3138, %v2170, 0.0
        %v3175 = vsel %vm3139, %v2175, 0.0
        %v3176 = vsel %vm3140, %v2180, 0.0
        %v3177 = vsel %vm3141, %v2185, 0.0
        %v3178 = vsel %vm3142, %v2190, 0.0
        %v3179 = vsel %vm3143, %v2195, 0.0
        %v3180 = vsel %vm3144, %v2200, 0.0
        %v3181 = vsel %vm3145, %v2205, 0.0
        %v3182 = vsel %vm3146, %v2210, 0.0
        %v3183 = vsel %vm3147, %v2215, 0.0
        %v3184 = vsel %vm3148, %v2220, 0.0
        %v3185 = vsel %vm3149, %v2225, 0.0
        %v3186 = vsel %vm3150, %v2230, 0.0
        %v3187 = vsel %vm3151, %v2235, 0.0
        %v3188 = vsel %vm3152, %v2240, 0.0
        %v3189 = vsel %vm3153, %v2245, 0.0
        %v3190 = vsel %vm3154, %v2250, 0.0
        %v3191 = vsel %vm3155, %v2255, 0.0
        %v3192 = vsel %vm3156, %v2260, 0.0
        %v3193 = vsel %vm3157, %v2265, 0.0
        %v3194 = vsel %vm3158, %v2270, 0.0
        %v3195 = vsel %vm3159, %v2275, 0.0
        %v3196 = vsel %vm3160, %v2280, 0.0
        %v3197 = vsel %vm3161, %v2285, 0.0
        %v3198 = vsel %vm3162, %v2290, 0.0
        %v3199 = vsel %vm3163, %v2295, 0.0
        %v3200 = vsel %vm3164, %v2300, 0.0
        %v3201 = vsel %vm3165, %v2305, 0.0
        %v3202 = vsel %vm3166, %v2310, 0.0
        %v3203 = vsel %vm3167, %v2315, 0.0
        %v3204 = vsel %vm3168, %v2320, 0.0
        %v3205 = vsel %vm3169, %v2325, 0.0
        %v3206 = vsel %vm3170, %v2330, 0.0
        %v3207 = vsel %vm3171, %v2335, 0.0
        %v3208 = vsel %vm3172, %v2340, 0.0
        %3209 = vst [vmem:[%s177] sm:$0xff] 0.0
        %v3210 = vadd.f32 %v3173, %v3174
        %v3211 = vadd.f32 %v3210, %v3175
        %v3212 = vadd.f32 %v3211, %v3176
        %v3213 = vadd.f32 %v3212, %v3177
        %v3214 = vadd.f32 %v3213, %v3178
        %v3215 = vadd.f32 %v3214, %v3179
        %v3216 = vadd.f32 %v3215, %v3180
        %v3217 = vadd.f32 %v3216, %v3181
        %v3218 = vadd.f32 %v3217, %v3182
        %v3219 = vadd.f32 %v3218, %v3183
        %v3220 = vadd.f32 %v3219, %v3184
        %v3221 = vadd.f32 %v3220, %v3185
        %v3222 = vadd.f32 %v3221, %v3186
        %v3223 = vadd.f32 %v3222, %v3187
        %v3224 = vadd.f32 %v3223, %v3188
        %v3225 = vadd.f32 %v3224, %v3189
        %v3226 = vadd.f32 %v3225, %v3190
        %v3227 = vadd.f32 %v3226, %v3191
        %v3228 = vadd.f32 %v3227, %v3192
        %v3229 = vadd.f32 %v3228, %v3193
        %v3230 = vadd.f32 %v3229, %v3194
        %v3231 = vadd.f32 %v3230, %v3195
        %v3232 = vadd.f32 %v3231, %v3196
        %v3233 = vadd.f32 %v3232, %v3197
        %v3234 = vadd.f32 %v3233, %v3198
        %v3235 = vadd.f32 %v3234, %v3199
        %v3236 = vadd.f32 %v3235, %v3200
        %v3237 = vadd.f32 %v3236, %v3201
        %v3238 = vadd.f32 %v3237, %v3202
        %v3239 = vadd.f32 %v3238, %v3203
        %v3240 = vadd.f32 %v3239, %v3204
        %v3241 = vadd.f32 %v3240, %v3205
        %v3242 = vadd.f32 %v3241, %v3206
        %v3243 = vadd.f32 %v3242, %v3207
        %v3244 = vadd.f32 %v3243, %v3208
        %v3245 = vrot.slane %v3244, 4
        %v3246 = vadd.f32 %v3244, %v3245
        %v3247 = vrot.slane %v3246, 2
        %v3248 = vadd.f32 %v3246, %v3247
        %v3249 = vrot.slane %v3248, 1
        %v3250 = vadd.f32 %v3248, %v3249
        %3251 = vst [vmem:[%s177] sm:$0x1] %v3250
        %v3252 = vmul.f32 %v3173, %v3173
        %v3253 = vmul.f32 %v3174, %v3174
        %v3254 = vmul.f32 %v3175, %v3175
        %v3255 = vmul.f32 %v3176, %v3176
        %v3256 = vmul.f32 %v3177, %v3177
        %v3257 = vmul.f32 %v3178, %v3178
        %v3258 = vmul.f32 %v3179, %v3179
        %v3259 = vmul.f32 %v3180, %v3180
        %v3260 = vmul.f32 %v3181, %v3181
        %v3261 = vmul.f32 %v3182, %v3182
        %v3262 = vmul.f32 %v3183, %v3183
        %v3263 = vmul.f32 %v3184, %v3184
        %v3264 = vmul.f32 %v3185, %v3185
        %v3265 = vmul.f32 %v3186, %v3186
        %v3266 = vmul.f32 %v3187, %v3187
        %v3267 = vmul.f32 %v3188, %v3188
        %v3268 = vmul.f32 %v3189, %v3189
        %v3269 = vmul.f32 %v3190, %v3190
        %v3270 = vmul.f32 %v3191, %v3191
        %v3271 = vmul.f32 %v3192, %v3192
        %v3272 = vmul.f32 %v3193, %v3193
        %v3273 = vmul.f32 %v3194, %v3194
        %v3274 = vmul.f32 %v3195, %v3195
        %v3275 = vmul.f32 %v3196, %v3196
        %v3276 = vmul.f32 %v3197, %v3197
        %v3277 = vmul.f32 %v3198, %v3198
        %v3278 = vmul.f32 %v3199, %v3199
        %v3279 = vmul.f32 %v3200, %v3200
        %v3280 = vmul.f32 %v3201, %v3201
        %v3281 = vmul.f32 %v3202, %v3202
        %v3282 = vmul.f32 %v3203, %v3203
        %v3283 = vmul.f32 %v3204, %v3204
        %v3284 = vmul.f32 %v3205, %v3205
        %v3285 = vmul.f32 %v3206, %v3206
        %v3286 = vmul.f32 %v3207, %v3207
        %v3287 = vmul.f32 %v3208, %v3208
        %v3288 = vadd.f32 %v3252, %v3253
        %v3289 = vadd.f32 %v3288, %v3254
        %v3290 = vadd.f32 %v3289, %v3255
        %v3291 = vadd.f32 %v3290, %v3256
        %v3292 = vadd.f32 %v3291, %v3257
        %v3293 = vadd.f32 %v3292, %v3258
        %v3294 = vadd.f32 %v3293, %v3259
        %v3295 = vadd.f32 %v3294, %v3260
        %v3296 = vadd.f32 %v3295, %v3261
        %v3297 = vadd.f32 %v3296, %v3262
        %v3298 = vadd.f32 %v3297, %v3263
        %v3299 = vadd.f32 %v3298, %v3264
        %v3300 = vadd.f32 %v3299, %v3265
        %v3301 = vadd.f32 %v3300, %v3266
        %v3302 = vadd.f32 %v3301, %v3267
        %v3303 = vadd.f32 %v3302, %v3268
        %v3304 = vadd.f32 %v3303, %v3269
        %v3305 = vadd.f32 %v3304, %v3270
        %v3306 = vadd.f32 %v3305, %v3271
        %v3307 = vadd.f32 %v3306, %v3272
        %v3308 = vadd.f32 %v3307, %v3273
        %v3309 = vadd.f32 %v3308, %v3274
        %v3310 = vadd.f32 %v3309, %v3275
        %v3311 = vadd.f32 %v3310, %v3276
        %v3312 = vadd.f32 %v3311, %v3277
        %v3313 = vadd.f32 %v3312, %v3278
        %v3314 = vadd.f32 %v3313, %v3279
        %v3315 = vadd.f32 %v3314, %v3280
        %v3316 = vadd.f32 %v3315, %v3281
        %v3317 = vadd.f32 %v3316, %v3282
        %v3318 = vadd.f32 %v3317, %v3283
        %v3319 = vadd.f32 %v3318, %v3284
        %v3320 = vadd.f32 %v3319, %v3285
        %v3321 = vadd.f32 %v3320, %v3286
        %v3322 = vadd.f32 %v3321, %v3287
        %v3323 = vrot.slane %v3322, 4
        %v3324 = vadd.f32 %v3322, %v3323
        %v3325 = vrot.slane %v3324, 2
        %v3326 = vadd.f32 %v3324, %v3325
        %v3327 = vrot.slane %v3326, 1
        %v3328 = vadd.f32 %v3326, %v3327
        %3329 = vst [vmem:[%s177 + $0x1] sm:$0x1] %v3328
        %s3330 = sand.u32 %s107, 1
        %s3331 = scalar_lea.sflag [#allocation3], %s3330
        %s3332 = sand.u32 %s107, 1
        %s3333 = smul.addr %s3332, 8
        %s3334 = scalar_lea.vmem [#allocation2], %s3333
        // Predicated region
        $region33: #{tpu_custom_call.1} parent=31 // pred_check
          %p3335 = pneg %p117
        $region34: #{tpu_custom_call.1} parent=31 // pred_check_branch
          %3337 = sbr.rel (%p3335) target = $region36
        $region35: #{tpu_custom_call.1} parent=31 // pred_region
          %s3339 = ssub.s32 128, 128
          %3340 = vsyncadd %s3331, %s3339
          %s3341 = sadd.s32 %s22, %s21
          %s3342 = smul.addr %s3341, 128
          %s3343 = scalar_lea.hbm %s3, %s3342
          %s3345 = sshll.u32 %s3334, 4
          %s3346 = int_to_ptr.vmem [resolvable:$true] %s3345
          %3348 = dma.vmem_to_hbm [thread:$0]  %s3346, 128, %s3343, %s3331
        $region36: #{tpu_custom_call.1} parent=31 // pred_fallthru
          _
      $region32: #{tpu_custom_call.1} parent=5 // pred_fallthru
        _
      %p3349 = scmp.le.s32.totalorder 2, %s12
      // Predicated region
      $region37: #{tpu_custom_call.1} parent=5 // pred_check
        %p3350 = pneg %p3349
      $region38: #{tpu_custom_call.1} parent=5 // pred_check_branch
        %3352 = sbr.rel (%p3350) target = $region40
      $region39: #{tpu_custom_call.1} parent=5 // pred_region
        %s3353 = ssub.s32 %s12, 2
        // Predicated region
        $region41: #{tpu_custom_call.1} parent=39 // pred_check
          %p3354 = pneg %p123
        $region42: #{tpu_custom_call.1} parent=39 // pred_check_branch
          %3356 = sbr.rel (%p3354) target = $region44
        $region43: #{tpu_custom_call.1} parent=39 // pred_region
          %s3357 = sand.u32 %s108, 1
          %s3358 = scalar_lea.sflag [#allocation3], %s3357
          %s3359 = sand.u32 %s108, 1
          %s3360 = smul.addr %s3359, 8
          %s3361 = scalar_lea.vmem [#allocation2], %s3360
          %3362 = dma.done %s3358, 128
        $region44: #{tpu_custom_call.1} parent=39 // pred_fallthru
          _
      $region40: #{tpu_custom_call.1} parent=5 // pred_fallthru
        _
    $region6: #{tpu_custom_call.1} parent=1 // loop_footer
      %s16 = sadd.s32 1, %s12
    $region7: #{tpu_custom_call.1} parent=1 // loop_footer_branch
      %11 = sbr.rel target = $region3
    $region8: #{tpu_custom_call.1} parent=1 // loop_exit
      _
    %3363 = vsyncpa [#allocation3], 1
    %s3364 = scalar_lea.sflag [#allocation3], 1
    %3365 = vsyncpa %s3364, 1

</llo_original>
